<compile_context>
chip_gen: v6e
topology: v6e:2x2x1
jax: 0.10.0
libtpu: 0.0.40
codegen_flags: <defaults>
</compile_context>

<pallas_src>
import jax
import jax.numpy as jnp
from jax.experimental import pallas as pl
from jax.experimental.pallas import tpu as pltpu

HIDDEN = 32        # hidden_size
VOCAB = 24         # output_size
MAX_LENGTH = 10    # max_length (encoder positions attended over)
BATCH = 8          # decoder instances per kernel (>=8 fills vreg sublanes)

# ---- packed-parameter slab layout -------------------------------------------
# Weight slab: (N_WPAGES, 32, 128) f32.  Each page holds one matrix stored
# input-dim-on-rows / output-dim-on-lanes, zero padded to (32, 128).
W_EMB, W_ATTN_X, W_ATTN_H, W_COMB_X, W_COMB_A = 0, 1, 2, 3, 4
W_IR, W_HR, W_IZ, W_HZ, W_IN, W_HN, W_OUT = 5, 6, 7, 8, 9, 10, 11
N_WPAGES = 12
# Bias slab: (8, 128) f32, one bias vector per row (lane offset 0).
B_ATTN, B_COMB, B_R, B_Z, B_IN, B_HN, B_OUT = 0, 1, 2, 3, 4, 5, 6

PACK_USED = VOCAB + HIDDEN + MAX_LENGTH   # 66 payload lanes: [logp | h_new | attn_w]
PACK_W = 128                              # lane-dense output width


def attn_decoder_kernel(
    onehot_ref,   # (B, V)             one-hot token for this step (T dim squeezed)
    h0_ref,       # (B, H)             initial hidden state
    enc_ref,      # (L, B, H)          encoder outputs, time-major
    w_ref,        # (N_WPAGES, 32,128) packed weight pages (VMEM-resident)
    b_ref,        # (8, 128)           packed bias rows   (VMEM-resident)
    out_ref,      # (B, 128)           packed [logp | h_new | attn_w | 0] this step
    h_scr,        # (B, H) VMEM        hidden state carried across grid steps
):
    f32 = jnp.float32
    H, L, V = HIDDEN, MAX_LENGTH, VOCAB
    t = pl.program_id(0)

    @pl.when(t == 0)
    def _init():
        h_scr[...] = h0_ref[...]

    h = h_scr[...]                                                   # (B, H)

    # Embedding lookup as a one-hot matmul (dropout == identity: eval mode).
    x = jnp.dot(onehot_ref[...], w_ref[W_EMB, :V, :H],
                preferred_element_type=f32)                          # (B, H)

    # attn_weights = softmax(attn(cat(x, h)), dim=1)
    # cat(x, h) @ W == x @ W[:H] + h @ W[H:]  (the two halves live in separate pages)
    attn_logits = (
        jnp.dot(x, w_ref[W_ATTN_X, :, :L], preferred_element_type=f32)
        + jnp.dot(h, w_ref[W_ATTN_H, :, :L], preferred_element_type=f32)
        + b_ref[B_ATTN:B_ATTN + 1, :L])                              # (B, L)
    m = jnp.max(attn_logits, axis=1, keepdims=True)
    e = jnp.exp(attn_logits - m)
    attn_w = e * pl.reciprocal(jnp.sum(e, axis=1, keepdims=True), approx=True)

    # attn_applied[b] = attn_w[b] @ enc[b]  (unrolled over L=10 positions;
    # enc is time-major so enc_ref[l] is a clean (B, H) leading-axis load).
    attn_applied = jnp.zeros((BATCH, H), f32)
    for l in range(L):
        attn_applied = attn_applied + attn_w[:, l:l + 1] * enc_ref[l]

    # output = relu(attn_combine(cat(x, attn_applied)))
    comb = (
        jnp.dot(x, w_ref[W_COMB_X, :, :H], preferred_element_type=f32)
        + jnp.dot(attn_applied, w_ref[W_COMB_A, :, :H], preferred_element_type=f32)
        + b_ref[B_COMB:B_COMB + 1, :H])
    g = jnp.maximum(comb, 0.0)                                       # (B, H)

    # Single-step GRU, PyTorch gate order (r, z, n); one weight page per gate so
    # each gate lands in its own vreg (no lane slicing of a fused (B, 3H) result).
    def mm(a, page):
        return jnp.dot(a, w_ref[page, :, :H], preferred_element_type=f32)

    r = jax.nn.sigmoid(mm(g, W_IR) + mm(h, W_HR) + b_ref[B_R:B_R + 1, :H])
    z = jax.nn.sigmoid(mm(g, W_IZ) + mm(h, W_HZ) + b_ref[B_Z:B_Z + 1, :H])
    n = jnp.tanh(mm(g, W_IN) + b_ref[B_IN:B_IN + 1, :H]
                 + r * (mm(h, W_HN) + b_ref[B_HN:B_HN + 1, :H]))
    h_new = (1.0 - z) * n + z * h                                    # (B, H)
    h_scr[...] = h_new

    # output = log_softmax(out(h_new), dim=1)
    logits = (jnp.dot(h_new, w_ref[W_OUT, :, :V], preferred_element_type=f32)
              + b_ref[B_OUT:B_OUT + 1, :V])                          # (B, V)
    shifted = logits - jnp.max(logits, axis=1, keepdims=True)
    logp = shifted - jnp.log(jnp.sum(jnp.exp(shifted), axis=1, keepdims=True))

    # One lane-dense (B, 128) store: [logp | h_new | attn_w | zero pad].
    pad = jnp.zeros((BATCH, PACK_W - PACK_USED), f32)
    out_ref[...] = jnp.concatenate([logp, h_new, attn_w, pad], axis=1)


def pack_params(params):
    """Pack the 13 parameter tensors into two VMEM slabs (weights + biases)."""
    H, V, L = HIDDEN, VOCAB, MAX_LENGTH
    w = jnp.zeros((N_WPAGES, 32, 128), jnp.float32)

    def put(slab, page, mat):
        r, c = mat.shape
        return slab.at[page, :r, :c].set(mat)

    w = put(w, W_EMB, params["embedding"])            # (V, H)
    w = put(w, W_ATTN_X, params["attn_w"][:H, :])     # (H, L)
    w = put(w, W_ATTN_H, params["attn_w"][H:, :])     # (H, L)
    w = put(w, W_COMB_X, params["comb_w"][:H, :])     # (H, H)
    w = put(w, W_COMB_A, params["comb_w"][H:, :])     # (H, H)
    w = put(w, W_IR, params["gru_wi"][:, :H])
    w = put(w, W_IZ, params["gru_wi"][:, H:2 * H])
    w = put(w, W_IN, params["gru_wi"][:, 2 * H:])
    w = put(w, W_HR, params["gru_wh"][:, :H])
    w = put(w, W_HZ, params["gru_wh"][:, H:2 * H])
    w = put(w, W_HN, params["gru_wh"][:, 2 * H:])
    w = put(w, W_OUT, params["out_w"])                # (H, V)

    b = jnp.zeros((8, 128), jnp.float32)
    b = b.at[B_ATTN, :L].set(params["attn_b"][0])
    b = b.at[B_COMB, :H].set(params["comb_b"][0])
    # r/z gates: input & hidden biases always add together -> fold on the host.
    b = b.at[B_R, :H].set(params["gru_bi"][0, :H] + params["gru_bh"][0, :H])
    b = b.at[B_Z, :H].set(params["gru_bi"][0, H:2 * H] + params["gru_bh"][0, H:2 * H])
    b = b.at[B_IN, :H].set(params["gru_bi"][0, 2 * H:])
    b = b.at[B_HN, :H].set(params["gru_bh"][0, 2 * H:])
    b = b.at[B_OUT, :V].set(params["out_b"][0])
    return w, b


def attn_decoder_decode(params, tokens, hidden0, encoder_outputs):
    """Run a T-step, B-way-batched decode in a single pallas_call.

    tokens:          (T, B) int32  per-step decoder input tokens (teacher forced)
    hidden0:         (B, H) f32    initial hidden state per instance (initHidden)
    encoder_outputs: (B, L, H) f32 encoder outputs per instance
    Returns (logp (T,B,V), hidden (T,B,H), attn_weights (T,B,L)); each step/row
    matches the PyTorch single-step forward, hidden[-1] is the final GRU state.
    """
    T, B = tokens.shape
    assert B == BATCH
    w_slab, b_slab = pack_params(params)
    onehot = jax.nn.one_hot(tokens, VOCAB, dtype=jnp.float32)       # (T, B, V)
    enc_t = jnp.transpose(encoder_outputs, (1, 0, 2))               # (L, B, H)

    grid_spec = pltpu.PrefetchScalarGridSpec(
        num_scalar_prefetch=0,
        grid=(T,),
        in_specs=[
            pl.BlockSpec((None, B, VOCAB), lambda t: (t, 0, 0)),         # per-step
            pl.BlockSpec((B, HIDDEN), lambda t: (0, 0)),                 # resident
            pl.BlockSpec((MAX_LENGTH, B, HIDDEN), lambda t: (0, 0, 0)),  # resident
            pl.BlockSpec((N_WPAGES, 32, 128), lambda t: (0, 0, 0)),      # resident
            pl.BlockSpec((8, 128), lambda t: (0, 0)),                    # resident
        ],
        out_specs=pl.BlockSpec((None, B, PACK_W), lambda t: (t, 0, 0)),
        scratch_shapes=[pltpu.VMEM((B, HIDDEN), jnp.float32)],
    )

    flops_per_row = 2 * (VOCAB * HIDDEN + 2 * HIDDEN * MAX_LENGTH
                         + MAX_LENGTH * HIDDEN + 2 * HIDDEN * HIDDEN
                         + 6 * HIDDEN * HIDDEN + HIDDEN * VOCAB)
    cost = pl.CostEstimate(
        flops=int(T * B * flops_per_row),
        transcendentals=int(T * B * (MAX_LENGTH + 3 * HIDDEN + VOCAB + 1)),
        bytes_accessed=int(4 * (w_slab.size + b_slab.size + onehot.size
                                + hidden0.size + enc_t.size + T * B * PACK_W)),
    )

    packed = pl.pallas_call(
        attn_decoder_kernel,
        out_shape=jax.ShapeDtypeStruct((T, B, PACK_W), jnp.float32),
        grid_spec=grid_spec,
        compiler_params=pltpu.CompilerParams(
            dimension_semantics=("arbitrary",)),  # hidden carries step -> step
        cost_estimate=cost,
    )(onehot, hidden0, enc_t, w_slab, b_slab)

    logp = packed[:, :, :VOCAB]
    hid = packed[:, :, VOCAB:VOCAB + HIDDEN]
    attnw = packed[:, :, VOCAB + HIDDEN:PACK_USED]
    return logp, hid, attnw


def reference_decode(params, tokens, hidden0, encoder_outputs):
    """Pure-JAX mirror of the PyTorch forward (eval mode), looped over T steps."""
    H = HIDDEN
    T, _ = tokens.shape
    h = hidden0
    logps, hids, attws = [], [], []
    for t in range(T):
        x = params["embedding"][tokens[t]]                               # (B, H)
        attn_logits = jnp.concatenate([x, h], 1) @ params["attn_w"] + params["attn_b"]
        aw = jax.nn.softmax(attn_logits, axis=1)                         # (B, L)
        attn_applied = jnp.einsum("bl,blh->bh", aw, encoder_outputs)
        comb = jnp.concatenate([x, attn_applied], 1) @ params["comb_w"] + params["comb_b"]
        g = jax.nn.relu(comb)
        gi = g @ params["gru_wi"] + params["gru_bi"]
        gh = h @ params["gru_wh"] + params["gru_bh"]
        i_r, i_z, i_n = gi[:, :H], gi[:, H:2 * H], gi[:, 2 * H:]
        h_r, h_z, h_n = gh[:, :H], gh[:, H:2 * H], gh[:, 2 * H:]
        r = jax.nn.sigmoid(i_r + h_r)
        z = jax.nn.sigmoid(i_z + h_z)
        n = jnp.tanh(i_n + r * h_n)
        h = (1.0 - z) * n + z * h
        logits = h @ params["out_w"] + params["out_b"]
        logps.append(jax.nn.log_softmax(logits, axis=1))
        hids.append(h)
        attws.append(aw)
    return jnp.stack(logps), jnp.stack(hids), jnp.stack(attws)


def init_params(key):
    H, V, L = HIDDEN, VOCAB, MAX_LENGTH
    ks = jax.random.split(key, 12)
    u = lambda k, shape, s: jax.random.uniform(k, shape, jnp.float32, -s, s)
    return {
        # nn.Embedding(output_size, hidden_size)
        "embedding": jax.random.normal(ks[0], (V, H), jnp.float32),
        # nn.Linear(2H, L)  -> stored as (2H, L) (i.e. PyTorch weight.T)
        "attn_w": u(ks[1], (2 * H, L), 0.1), "attn_b": u(ks[2], (1, L), 0.1),
        # nn.Linear(2H, H)
        "comb_w": u(ks[3], (2 * H, H), 0.1), "comb_b": u(ks[4], (1, H), 0.1),
        # nn.GRU(H, H): weight_ih_l0 (3H, H), weight_hh_l0 (3H, H) -> stored transposed
        "gru_wi": u(ks[5], (H, 3 * H), 0.1), "gru_wh": u(ks[6], (H, 3 * H), 0.1),
        "gru_bi": u(ks[7], (1, 3 * H), 0.1), "gru_bh": u(ks[8], (1, 3 * H), 0.1),
        # nn.Linear(H, V)
        "out_w": u(ks[9], (H, V), 0.1), "out_b": u(ks[10], (1, V), 0.1),
    }


if __name__ == "__main__":
    key = jax.random.PRNGKey(0)
    k_params, k_enc, k_tok = jax.random.split(key, 3)
    params = init_params(k_params)

    T, B = MAX_LENGTH, BATCH                                        # 10 steps, 8 instances
    tokens = jax.random.randint(k_tok, (T, B), 0, VOCAB, dtype=jnp.int32)
    hidden0 = jnp.zeros((B, HIDDEN), jnp.float32)                   # initHidden() per row
    encoder_outputs = jax.random.normal(k_enc, (B, MAX_LENGTH, HIDDEN), jnp.float32)

    logp, hid, attnw = attn_decoder_decode(params, tokens, hidden0, encoder_outputs)
    jax.block_until_ready((logp, hid, attnw))

    r_logp, r_hid, r_attnw = reference_decode(params, tokens, hidden0, encoder_outputs)
    assert logp.shape == (T, B, VOCAB)
    assert hid.shape == (T, B, HIDDEN)
    assert attnw.shape == (T, B, MAX_LENGTH)
    # 2e-3 tolerance covers the approximate (EUP) reciprocal in the softmax denom.
    assert jnp.allclose(logp, r_logp, atol=2e-3), "log_softmax mismatch"
    assert jnp.allclose(hid, r_hid, atol=2e-3), "hidden mismatch"
    assert jnp.allclose(attnw, r_attnw, atol=2e-3), "attn_weights mismatch"
    print("KERNEL_OK")
</pallas_src>

<mosaic_0001>
module attributes {stable_mosaic.version = 11 : i64} {
  func.func @attn_decoder_kernel(%arg0: i32, %arg1: memref<1x8x24xf32, #tpu.memory_space<vmem>>, %arg2: memref<8x32xf32, #tpu.memory_space<vmem>>, %arg3: memref<10x8x32xf32, #tpu.memory_space<vmem>>, %arg4: memref<12x32x128xf32, #tpu.memory_space<vmem>>, %arg5: memref<8x128xf32, #tpu.memory_space<vmem>>, %arg6: memref<1x8x128xf32, #tpu.memory_space<vmem>>, %arg7: memref<8x32xf32, #tpu.memory_space<vmem>>) attributes {dimension_semantics = [#tpu.dimension_semantics<arbitrary>], iteration_bounds = array<i64: 10>, scalar_prefetch = 0 : i64, scratch_operands = 1 : i64, tpu.core_type = #tpu.core_type<tc>, window_params = [{transform_indices = @transform_0, window_bounds = array<i64: 1, 8, 24>}, {pipeline_mode = #tpu.pipeline_mode<synchronous>, transform_indices = @transform_1, window_bounds = array<i64: 8, 32>}, {pipeline_mode = #tpu.pipeline_mode<synchronous>, transform_indices = @transform_2, window_bounds = array<i64: 10, 8, 32>}, {pipeline_mode = #tpu.pipeline_mode<synchronous>, transform_indices = @transform_3, window_bounds = array<i64: 12, 32, 128>}, {pipeline_mode = #tpu.pipeline_mode<synchronous>, transform_indices = @transform_4, window_bounds = array<i64: 8, 128>}, {transform_indices = @transform_5, window_bounds = array<i64: 1, 8, 128>}]} {
    %c0_i32 = arith.constant 0 : i32
    %0 = arith.cmpi eq, %arg0, %c0_i32 : i32
    %1 = arith.extui %0 : i1 to i32
    %c0_i32_0 = arith.constant 0 : i32
    %2 = arith.cmpi ne, %1, %c0_i32_0 : i32
    scf.if %2 {
      %c0_100 = arith.constant 0 : index
      %c0_101 = arith.constant 0 : index
      %174 = vector.load %arg2[%c0_100, %c0_101] : memref<8x32xf32, #tpu.memory_space<vmem>>, vector<8x32xf32>
      %c0_102 = arith.constant 0 : index
      %c0_103 = arith.constant 0 : index
      %175 = vector.load %arg7[%c0_102, %c0_103] : memref<8x32xf32, #tpu.memory_space<vmem>>, vector<8x32xf32>
      tpu.vector_store %arg7[%c0_102, %c0_103], %174 {strides = array<i32>} : memref<8x32xf32, #tpu.memory_space<vmem>>, vector<8x32xf32>,
    } else {
    }
    %c0 = arith.constant 0 : index
    %c0_1 = arith.constant 0 : index
    %3 = vector.load %arg7[%c0, %c0_1] : memref<8x32xf32, #tpu.memory_space<vmem>>, vector<8x32xf32>
    %c0_2 = arith.constant 0 : index
    %c0_3 = arith.constant 0 : index
    %c0_4 = arith.constant 0 : index
    %4 = vector.load %arg1[%c0_2, %c0_3, %c0_4] : memref<1x8x24xf32, #tpu.memory_space<vmem>>, vector<1x8x24xf32>
    %5 = vector.shape_cast %4 : vector<1x8x24xf32> to vector<8x24xf32>
    %c0_5 = arith.constant 0 : index
    %c0_6 = arith.constant 0 : index
    %c0_7 = arith.constant 0 : index
    %6 = vector.load %arg4[%c0_5, %c0_6, %c0_7] : memref<12x32x128xf32, #tpu.memory_space<vmem>>, vector<1x24x32xf32>
    %7 = vector.shape_cast %6 : vector<1x24x32xf32> to vector<24x32xf32>
    %cst = arith.constant dense<0.000000e+00> : vector<8x32xf32>
    %8 = tpu.matmul %5, %7, %cst {dimension_numbers = #tpu.dot_dimension_numbers<[1], [0], [0], [1], [0, 0, 1, 1], [], []>} : vector<8x24xf32>, vector<24x32xf32>, vector<8x32xf32> -> vector<8x32xf32>
    %c1 = arith.constant 1 : index
    %c0_8 = arith.constant 0 : index
    %c0_9 = arith.constant 0 : index
    %9 = vector.load %arg4[%c1, %c0_8, %c0_9] : memref<12x32x128xf32, #tpu.memory_space<vmem>>, vector<1x32x10xf32>
    %10 = vector.shape_cast %9 : vector<1x32x10xf32> to vector<32x10xf32>
    %cst_10 = arith.constant dense<0.000000e+00> : vector<8x10xf32>
    %11 = tpu.matmul %8, %10, %cst_10 {dimension_numbers = #tpu.dot_dimension_numbers<[1], [0], [0], [1], [0, 0, 1, 1], [], []>} : vector<8x32xf32>, vector<32x10xf32>, vector<8x10xf32> -> vector<8x10xf32>
    %c2 = arith.constant 2 : index
    %c0_11 = arith.constant 0 : index
    %c0_12 = arith.constant 0 : index
    %12 = vector.load %arg4[%c2, %c0_11, %c0_12] : memref<12x32x128xf32, #tpu.memory_space<vmem>>, vector<1x32x10xf32>
    %13 = vector.shape_cast %12 : vector<1x32x10xf32> to vector<32x10xf32>
    %cst_13 = arith.constant dense<0.000000e+00> : vector<8x10xf32>
    %14 = tpu.matmul %3, %13, %cst_13 {dimension_numbers = #tpu.dot_dimension_numbers<[1], [0], [0], [1], [0, 0, 1, 1], [], []>} : vector<8x32xf32>, vector<32x10xf32>, vector<8x10xf32> -> vector<8x10xf32>
    %15 = arith.addf %11, %14 : vector<8x10xf32>
    %c0_14 = arith.constant 0 : index
    %c0_15 = arith.constant 0 : index
    %16 = vector.load %arg5[%c0_14, %c0_15] : memref<8x128xf32, #tpu.memory_space<vmem>>, vector<1x10xf32>
    %17 = vector.broadcast %16 : vector<1x10xf32> to vector<8x10xf32>
    %18 = arith.addf %15, %17 : vector<8x10xf32>
    %cst_16 = arith.constant dense<0xFF800000> : vector<8xf32>
    %19 = vector.multi_reduction <maximumf>, %18, %cst_16 [1] : vector<8x10xf32> to vector<8xf32>
    %20 = vector.shape_cast %19 : vector<8xf32> to vector<8x1xf32>
    %21 = vector.broadcast %20 : vector<8x1xf32> to vector<8x10xf32>
    %22 = arith.subf %18, %21 : vector<8x10xf32>
    %23 = math.exp %22 : vector<8x10xf32>
    %cst_17 = arith.constant dense<0.000000e+00> : vector<8xf32>
    %24 = vector.multi_reduction <add>, %23, %cst_17 [1] : vector<8x10xf32> to vector<8xf32>
    %25 = vector.shape_cast %24 : vector<8xf32> to vector<8x1xf32>
    %26 = tpu.reciprocal %25 {approx = true} : vector<8x1xf32> -> vector<8x1xf32>
    %27 = vector.broadcast %26 : vector<8x1xf32> to vector<8x10xf32>
    %28 = arith.mulf %23, %27 : vector<8x10xf32>
    %cst_18 = arith.constant 0.000000e+00 : f32
    %29 = vector.broadcast %cst_18 : f32 to vector<8x32xf32>
    %30 = vector.extract_strided_slice %28 {offsets = [0, 0], sizes = [8, 1], strides = [1, 1]} : vector<8x10xf32> to vector<8x1xf32>
    %c0_19 = arith.constant 0 : index
    %c0_20 = arith.constant 0 : index
    %c0_21 = arith.constant 0 : index
    %31 = vector.load %arg3[%c0_19, %c0_20, %c0_21] : memref<10x8x32xf32, #tpu.memory_space<vmem>>, vector<1x8x32xf32>
    %32 = vector.shape_cast %31 : vector<1x8x32xf32> to vector<8x32xf32>
    %33 = vector.broadcast %30 : vector<8x1xf32> to vector<8x32xf32>
    %34 = arith.mulf %33, %32 : vector<8x32xf32>
    %35 = arith.addf %29, %34 : vector<8x32xf32>
    %36 = vector.extract_strided_slice %28 {offsets = [0, 1], sizes = [8, 1], strides = [1, 1]} : vector<8x10xf32> to vector<8x1xf32>
    %c1_22 = arith.constant 1 : index
    %c0_23 = arith.constant 0 : index
    %c0_24 = arith.constant 0 : index
    %37 = vector.load %arg3[%c1_22, %c0_23, %c0_24] : memref<10x8x32xf32, #tpu.memory_space<vmem>>, vector<1x8x32xf32>
    %38 = vector.shape_cast %37 : vector<1x8x32xf32> to vector<8x32xf32>
    %39 = vector.broadcast %36 : vector<8x1xf32> to vector<8x32xf32>
    %40 = arith.mulf %39, %38 : vector<8x32xf32>
    %41 = arith.addf %35, %40 : vector<8x32xf32>
    %42 = vector.extract_strided_slice %28 {offsets = [0, 2], sizes = [8, 1], strides = [1, 1]} : vector<8x10xf32> to vector<8x1xf32>
    %c2_25 = arith.constant 2 : index
    %c0_26 = arith.constant 0 : index
    %c0_27 = arith.constant 0 : index
    %43 = vector.load %arg3[%c2_25, %c0_26, %c0_27] : memref<10x8x32xf32, #tpu.memory_space<vmem>>, vector<1x8x32xf32>
    %44 = vector.shape_cast %43 : vector<1x8x32xf32> to vector<8x32xf32>
    %45 = vector.broadcast %42 : vector<8x1xf32> to vector<8x32xf32>
    %46 = arith.mulf %45, %44 : vector<8x32xf32>
    %47 = arith.addf %41, %46 : vector<8x32xf32>
    %48 = vector.extract_strided_slice %28 {offsets = [0, 3], sizes = [8, 1], strides = [1, 1]} : vector<8x10xf32> to vector<8x1xf32>
    %c3 = arith.constant 3 : index
    %c0_28 = arith.constant 0 : index
    %c0_29 = arith.constant 0 : index
    %49 = vector.load %arg3[%c3, %c0_28, %c0_29] : memref<10x8x32xf32, #tpu.memory_space<vmem>>, vector<1x8x32xf32>
    %50 = vector.shape_cast %49 : vector<1x8x32xf32> to vector<8x32xf32>
    %51 = vector.broadcast %48 : vector<8x1xf32> to vector<8x32xf32>
    %52 = arith.mulf %51, %50 : vector<8x32xf32>
    %53 = arith.addf %47, %52 : vector<8x32xf32>
    %54 = vector.extract_strided_slice %28 {offsets = [0, 4], sizes = [8, 1], strides = [1, 1]} : vector<8x10xf32> to vector<8x1xf32>
    %c4 = arith.constant 4 : index
    %c0_30 = arith.constant 0 : index
    %c0_31 = arith.constant 0 : index
    %55 = vector.load %arg3[%c4, %c0_30, %c0_31] : memref<10x8x32xf32, #tpu.memory_space<vmem>>, vector<1x8x32xf32>
    %56 = vector.shape_cast %55 : vector<1x8x32xf32> to vector<8x32xf32>
    %57 = vector.broadcast %54 : vector<8x1xf32> to vector<8x32xf32>
    %58 = arith.mulf %57, %56 : vector<8x32xf32>
    %59 = arith.addf %53, %58 : vector<8x32xf32>
    %60 = vector.extract_strided_slice %28 {offsets = [0, 5], sizes = [8, 1], strides = [1, 1]} : vector<8x10xf32> to vector<8x1xf32>
    %c5 = arith.constant 5 : index
    %c0_32 = arith.constant 0 : index
    %c0_33 = arith.constant 0 : index
    %61 = vector.load %arg3[%c5, %c0_32, %c0_33] : memref<10x8x32xf32, #tpu.memory_space<vmem>>, vector<1x8x32xf32>
    %62 = vector.shape_cast %61 : vector<1x8x32xf32> to vector<8x32xf32>
    %63 = vector.broadcast %60 : vector<8x1xf32> to vector<8x32xf32>
    %64 = arith.mulf %63, %62 : vector<8x32xf32>
    %65 = arith.addf %59, %64 : vector<8x32xf32>
    %66 = vector.extract_strided_slice %28 {offsets = [0, 6], sizes = [8, 1], strides = [1, 1]} : vector<8x10xf32> to vector<8x1xf32>
    %c6 = arith.constant 6 : index
    %c0_34 = arith.constant 0 : index
    %c0_35 = arith.constant 0 : index
    %67 = vector.load %arg3[%c6, %c0_34, %c0_35] : memref<10x8x32xf32, #tpu.memory_space<vmem>>, vector<1x8x32xf32>
    %68 = vector.shape_cast %67 : vector<1x8x32xf32> to vector<8x32xf32>
    %69 = vector.broadcast %66 : vector<8x1xf32> to vector<8x32xf32>
    %70 = arith.mulf %69, %68 : vector<8x32xf32>
    %71 = arith.addf %65, %70 : vector<8x32xf32>
    %72 = vector.extract_strided_slice %28 {offsets = [0, 7], sizes = [8, 1], strides = [1, 1]} : vector<8x10xf32> to vector<8x1xf32>
    %c7 = arith.constant 7 : index
    %c0_36 = arith.constant 0 : index
    %c0_37 = arith.constant 0 : index
    %73 = vector.load %arg3[%c7, %c0_36, %c0_37] : memref<10x8x32xf32, #tpu.memory_space<vmem>>, vector<1x8x32xf32>
    %74 = vector.shape_cast %73 : vector<1x8x32xf32> to vector<8x32xf32>
    %75 = vector.broadcast %72 : vector<8x1xf32> to vector<8x32xf32>
    %76 = arith.mulf %75, %74 : vector<8x32xf32>
    %77 = arith.addf %71, %76 : vector<8x32xf32>
    %78 = vector.extract_strided_slice %28 {offsets = [0, 8], sizes = [8, 1], strides = [1, 1]} : vector<8x10xf32> to vector<8x1xf32>
    %c8 = arith.constant 8 : index
    %c0_38 = arith.constant 0 : index
    %c0_39 = arith.constant 0 : index
    %79 = vector.load %arg3[%c8, %c0_38, %c0_39] : memref<10x8x32xf32, #tpu.memory_space<vmem>>, vector<1x8x32xf32>
    %80 = vector.shape_cast %79 : vector<1x8x32xf32> to vector<8x32xf32>
    %81 = vector.broadcast %78 : vector<8x1xf32> to vector<8x32xf32>
    %82 = arith.mulf %81, %80 : vector<8x32xf32>
    %83 = arith.addf %77, %82 : vector<8x32xf32>
    %84 = vector.extract_strided_slice %28 {offsets = [0, 9], sizes = [8, 1], strides = [1, 1]} : vector<8x10xf32> to vector<8x1xf32>
    %c9 = arith.constant 9 : index
    %c0_40 = arith.constant 0 : index
    %c0_41 = arith.constant 0 : index
    %85 = vector.load %arg3[%c9, %c0_40, %c0_41] : memref<10x8x32xf32, #tpu.memory_space<vmem>>, vector<1x8x32xf32>
    %86 = vector.shape_cast %85 : vector<1x8x32xf32> to vector<8x32xf32>
    %87 = vector.broadcast %84 : vector<8x1xf32> to vector<8x32xf32>
    %88 = arith.mulf %87, %86 : vector<8x32xf32>
    %89 = arith.addf %83, %88 : vector<8x32xf32>
    %c3_42 = arith.constant 3 : index
    %c0_43 = arith.constant 0 : index
    %c0_44 = arith.constant 0 : index
    %90 = vector.load %arg4[%c3_42, %c0_43, %c0_44] : memref<12x32x128xf32, #tpu.memory_space<vmem>>, vector<1x32x32xf32>
    %91 = vector.shape_cast %90 : vector<1x32x32xf32> to vector<32x32xf32>
    %cst_45 = arith.constant dense<0.000000e+00> : vector<8x32xf32>
    %92 = tpu.matmul %8, %91, %cst_45 {dimension_numbers = #tpu.dot_dimension_numbers<[1], [0], [0], [1], [0, 0, 1, 1], [], []>} : vector<8x32xf32>, vector<32x32xf32>, vector<8x32xf32> -> vector<8x32xf32>
    %c4_46 = arith.constant 4 : index
    %c0_47 = arith.constant 0 : index
    %c0_48 = arith.constant 0 : index
    %93 = vector.load %arg4[%c4_46, %c0_47, %c0_48] : memref<12x32x128xf32, #tpu.memory_space<vmem>>, vector<1x32x32xf32>
    %94 = vector.shape_cast %93 : vector<1x32x32xf32> to vector<32x32xf32>
    %cst_49 = arith.constant dense<0.000000e+00> : vector<8x32xf32>
    %95 = tpu.matmul %89, %94, %cst_49 {dimension_numbers = #tpu.dot_dimension_numbers<[1], [0], [0], [1], [0, 0, 1, 1], [], []>} : vector<8x32xf32>, vector<32x32xf32>, vector<8x32xf32> -> vector<8x32xf32>
    %96 = arith.addf %92, %95 : vector<8x32xf32>
    %c1_50 = arith.constant 1 : index
    %c0_51 = arith.constant 0 : index
    %97 = vector.load %arg5[%c1_50, %c0_51] : memref<8x128xf32, #tpu.memory_space<vmem>>, vector<1x32xf32>
    %98 = vector.broadcast %97 : vector<1x32xf32> to vector<8x32xf32>
    %99 = arith.addf %96, %98 : vector<8x32xf32>
    %cst_52 = arith.constant 0.000000e+00 : f32
    %100 = vector.broadcast %cst_52 : f32 to vector<8x32xf32>
    %101 = arith.maximumf %99, %100 : vector<8x32xf32>
    %c5_53 = arith.constant 5 : index
    %c0_54 = arith.constant 0 : index
    %c0_55 = arith.constant 0 : index
    %102 = vector.load %arg4[%c5_53, %c0_54, %c0_55] : memref<12x32x128xf32, #tpu.memory_space<vmem>>, vector<1x32x32xf32>
    %103 = vector.shape_cast %102 : vector<1x32x32xf32> to vector<32x32xf32>
    %cst_56 = arith.constant dense<0.000000e+00> : vector<8x32xf32>
    %104 = tpu.matmul %101, %103, %cst_56 {dimension_numbers = #tpu.dot_dimension_numbers<[1], [0], [0], [1], [0, 0, 1, 1], [], []>} : vector<8x32xf32>, vector<32x32xf32>, vector<8x32xf32> -> vector<8x32xf32>
    %c6_57 = arith.constant 6 : index
    %c0_58 = arith.constant 0 : index
    %c0_59 = arith.constant 0 : index
    %105 = vector.load %arg4[%c6_57, %c0_58, %c0_59] : memref<12x32x128xf32, #tpu.memory_space<vmem>>, vector<1x32x32xf32>
    %106 = vector.shape_cast %105 : vector<1x32x32xf32> to vector<32x32xf32>
    %cst_60 = arith.constant dense<0.000000e+00> : vector<8x32xf32>
    %107 = tpu.matmul %3, %106, %cst_60 {dimension_numbers = #tpu.dot_dimension_numbers<[1], [0], [0], [1], [0, 0, 1, 1], [], []>} : vector<8x32xf32>, vector<32x32xf32>, vector<8x32xf32> -> vector<8x32xf32>
    %108 = arith.addf %104, %107 : vector<8x32xf32>
    %c2_61 = arith.constant 2 : index
    %c0_62 = arith.constant 0 : index
    %109 = vector.load %arg5[%c2_61, %c0_62] : memref<8x128xf32, #tpu.memory_space<vmem>>, vector<1x32xf32>
    %110 = vector.broadcast %109 : vector<1x32xf32> to vector<8x32xf32>
    %111 = arith.addf %108, %110 : vector<8x32xf32>
    %112 = arith.negf %111 : vector<8x32xf32>
    %113 = math.exp %112 : vector<8x32xf32>
    %cst_63 = arith.constant 1.000000e+00 : f32
    %114 = vector.broadcast %cst_63 : f32 to vector<8x32xf32>
    %115 = arith.addf %114, %113 : vector<8x32xf32>
    %116 = arith.divf %114, %115 : vector<8x32xf32>
    %c7_64 = arith.constant 7 : index
    %c0_65 = arith.constant 0 : index
    %c0_66 = arith.constant 0 : index
    %117 = vector.load %arg4[%c7_64, %c0_65, %c0_66] : memref<12x32x128xf32, #tpu.memory_space<vmem>>, vector<1x32x32xf32>
    %118 = vector.shape_cast %117 : vector<1x32x32xf32> to vector<32x32xf32>
    %cst_67 = arith.constant dense<0.000000e+00> : vector<8x32xf32>
    %119 = tpu.matmul %101, %118, %cst_67 {dimension_numbers = #tpu.dot_dimension_numbers<[1], [0], [0], [1], [0, 0, 1, 1], [], []>} : vector<8x32xf32>, vector<32x32xf32>, vector<8x32xf32> -> vector<8x32xf32>
    %c8_68 = arith.constant 8 : index
    %c0_69 = arith.constant 0 : index
    %c0_70 = arith.constant 0 : index
    %120 = vector.load %arg4[%c8_68, %c0_69, %c0_70] : memref<12x32x128xf32, #tpu.memory_space<vmem>>, vector<1x32x32xf32>
    %121 = vector.shape_cast %120 : vector<1x32x32xf32> to vector<32x32xf32>
    %cst_71 = arith.constant dense<0.000000e+00> : vector<8x32xf32>
    %122 = tpu.matmul %3, %121, %cst_71 {dimension_numbers = #tpu.dot_dimension_numbers<[1], [0], [0], [1], [0, 0, 1, 1], [], []>} : vector<8x32xf32>, vector<32x32xf32>, vector<8x32xf32> -> vector<8x32xf32>
    %123 = arith.addf %119, %122 : vector<8x32xf32>
    %c3_72 = arith.constant 3 : index
    %c0_73 = arith.constant 0 : index
    %124 = vector.load %arg5[%c3_72, %c0_73] : memref<8x128xf32, #tpu.memory_space<vmem>>, vector<1x32xf32>
    %125 = vector.broadcast %124 : vector<1x32xf32> to vector<8x32xf32>
    %126 = arith.addf %123, %125 : vector<8x32xf32>
    %127 = arith.negf %126 : vector<8x32xf32>
    %128 = math.exp %127 : vector<8x32xf32>
    %cst_74 = arith.constant 1.000000e+00 : f32
    %129 = vector.broadcast %cst_74 : f32 to vector<8x32xf32>
    %130 = arith.addf %129, %128 : vector<8x32xf32>
    %131 = arith.divf %129, %130 : vector<8x32xf32>
    %c9_75 = arith.constant 9 : index
    %c0_76 = arith.constant 0 : index
    %c0_77 = arith.constant 0 : index
    %132 = vector.load %arg4[%c9_75, %c0_76, %c0_77] : memref<12x32x128xf32, #tpu.memory_space<vmem>>, vector<1x32x32xf32>
    %133 = vector.shape_cast %132 : vector<1x32x32xf32> to vector<32x32xf32>
    %cst_78 = arith.constant dense<0.000000e+00> : vector<8x32xf32>
    %134 = tpu.matmul %101, %133, %cst_78 {dimension_numbers = #tpu.dot_dimension_numbers<[1], [0], [0], [1], [0, 0, 1, 1], [], []>} : vector<8x32xf32>, vector<32x32xf32>, vector<8x32xf32> -> vector<8x32xf32>
    %c4_79 = arith.constant 4 : index
    %c0_80 = arith.constant 0 : index
    %135 = vector.load %arg5[%c4_79, %c0_80] : memref<8x128xf32, #tpu.memory_space<vmem>>, vector<1x32xf32>
    %136 = vector.broadcast %135 : vector<1x32xf32> to vector<8x32xf32>
    %137 = arith.addf %134, %136 : vector<8x32xf32>
    %c10 = arith.constant 10 : index
    %c0_81 = arith.constant 0 : index
    %c0_82 = arith.constant 0 : index
    %138 = vector.load %arg4[%c10, %c0_81, %c0_82] : memref<12x32x128xf32, #tpu.memory_space<vmem>>, vector<1x32x32xf32>
    %139 = vector.shape_cast %138 : vector<1x32x32xf32> to vector<32x32xf32>
    %cst_83 = arith.constant dense<0.000000e+00> : vector<8x32xf32>
    %140 = tpu.matmul %3, %139, %cst_83 {dimension_numbers = #tpu.dot_dimension_numbers<[1], [0], [0], [1], [0, 0, 1, 1], [], []>} : vector<8x32xf32>, vector<32x32xf32>, vector<8x32xf32> -> vector<8x32xf32>
    %c5_84 = arith.constant 5 : index
    %c0_85 = arith.constant 0 : index
    %141 = vector.load %arg5[%c5_84, %c0_85] : memref<8x128xf32, #tpu.memory_space<vmem>>, vector<1x32xf32>
    %142 = vector.broadcast %141 : vector<1x32xf32> to vector<8x32xf32>
    %143 = arith.addf %140, %142 : vector<8x32xf32>
    %144 = arith.mulf %116, %143 : vector<8x32xf32>
    %145 = arith.addf %137, %144 : vector<8x32xf32>
    %146 = math.tanh %145 : vector<8x32xf32>
    %cst_86 = arith.constant 1.000000e+00 : f32
    %147 = vector.broadcast %cst_86 : f32 to vector<8x32xf32>
    %148 = arith.subf %147, %131 : vector<8x32xf32>
    %149 = arith.mulf %148, %146 : vector<8x32xf32>
    %150 = arith.mulf %131, %3 : vector<8x32xf32>
    %151 = arith.addf %149, %150 : vector<8x32xf32>
    %c0_87 = arith.constant 0 : index
    %c0_88 = arith.constant 0 : index
    %152 = vector.load %arg7[%c0_87, %c0_88] : memref<8x32xf32, #tpu.memory_space<vmem>>, vector<8x32xf32>
    tpu.vector_store %arg7[%c0_87, %c0_88], %151 {strides = array<i32>} : memref<8x32xf32, #tpu.memory_space<vmem>>, vector<8x32xf32>,
    %c11 = arith.constant 11 : index
    %c0_89 = arith.constant 0 : index
    %c0_90 = arith.constant 0 : index
    %153 = vector.load %arg4[%c11, %c0_89, %c0_90] : memref<12x32x128xf32, #tpu.memory_space<vmem>>, vector<1x32x24xf32>
    %154 = vector.shape_cast %153 : vector<1x32x24xf32> to vector<32x24xf32>
    %cst_91 = arith.constant dense<0.000000e+00> : vector<8x24xf32>
    %155 = tpu.matmul %151, %154, %cst_91 {dimension_numbers = #tpu.dot_dimension_numbers<[1], [0], [0], [1], [0, 0, 1, 1], [], []>} : vector<8x32xf32>, vector<32x24xf32>, vector<8x24xf32> -> vector<8x24xf32>
    %c6_92 = arith.constant 6 : index
    %c0_93 = arith.constant 0 : index
    %156 = vector.load %arg5[%c6_92, %c0_93] : memref<8x128xf32, #tpu.memory_space<vmem>>, vector<1x24xf32>
    %157 = vector.broadcast %156 : vector<1x24xf32> to vector<8x24xf32>
    %158 = arith.addf %155, %157 : vector<8x24xf32>
    %cst_94 = arith.constant dense<0xFF800000> : vector<8xf32>
    %159 = vector.multi_reduction <maximumf>, %158, %cst_94 [1] : vector<8x24xf32> to vector<8xf32>
    %160 = vector.shape_cast %159 : vector<8xf32> to vector<8x1xf32>
    %161 = vector.broadcast %160 : vector<8x1xf32> to vector<8x24xf32>
    %162 = arith.subf %158, %161 : vector<8x24xf32>
    %163 = math.exp %162 : vector<8x24xf32>
    %cst_95 = arith.constant dense<0.000000e+00> : vector<8xf32>
    %164 = vector.multi_reduction <add>, %163, %cst_95 [1] : vector<8x24xf32> to vector<8xf32>
    %165 = vector.shape_cast %164 : vector<8xf32> to vector<8x1xf32>
    %166 = math.log %165 : vector<8x1xf32>
    %167 = vector.broadcast %166 : vector<8x1xf32> to vector<8x24xf32>
    %168 = arith.subf %162, %167 : vector<8x24xf32>
    %cst_96 = arith.constant 0.000000e+00 : f32
    %169 = vector.broadcast %cst_96 : f32 to vector<8x62xf32>
    %170 = tpu.concatenate %168, %151, %28, %169 in 1 : vector<8x24xf32>, vector<8x32xf32>, vector<8x10xf32>, vector<8x62xf32> -> vector<8x128xf32>
    %c0_97 = arith.constant 0 : index
    %c0_98 = arith.constant 0 : index
    %c0_99 = arith.constant 0 : index
    %171 = vector.load %arg6[%c0_97, %c0_98, %c0_99] : memref<1x8x128xf32, #tpu.memory_space<vmem>>, vector<1x8x128xf32>
    %172 = vector.shape_cast %171 : vector<1x8x128xf32> to vector<8x128xf32>
    %173 = vector.shape_cast %170 : vector<8x128xf32> to vector<1x8x128xf32>
    tpu.vector_store %arg6[%c0_97, %c0_98, %c0_99], %173 {strides = array<i32>} : memref<1x8x128xf32, #tpu.memory_space<vmem>>, vector<1x8x128xf32>,
    return
  }
  func.func @transform_0(%arg0: i32) -> (i32, i32, i32) {
    %c0_i32 = arith.constant 0 : i32
    %c0_i32_0 = arith.constant 0 : i32
    %c0_i32_1 = arith.constant 0 : i32
    return %arg0, %c0_i32, %c0_i32_0 : i32, i32, i32
  }
  func.func @transform_1(%arg0: i32) -> (i32, i32) {
    %c0_i32 = arith.constant 0 : i32
    %c0_i32_0 = arith.constant 0 : i32
    %c0_i32_1 = arith.constant 0 : i32
    return %c0_i32, %c0_i32_0 : i32, i32
  }
  func.func @transform_2(%arg0: i32) -> (i32, i32, i32) {
    %c0_i32 = arith.constant 0 : i32
    %c0_i32_0 = arith.constant 0 : i32
    %c0_i32_1 = arith.constant 0 : i32
    %c0_i32_2 = arith.constant 0 : i32
    return %c0_i32, %c0_i32_0, %c0_i32_1 : i32, i32, i32
  }
  func.func @transform_3(%arg0: i32) -> (i32, i32, i32) {
    %c0_i32 = arith.constant 0 : i32
    %c0_i32_0 = arith.constant 0 : i32
    %c0_i32_1 = arith.constant 0 : i32
    %c0_i32_2 = arith.constant 0 : i32
    return %c0_i32, %c0_i32_0, %c0_i32_1 : i32, i32, i32
  }
  func.func @transform_4(%arg0: i32) -> (i32, i32) {
    %c0_i32 = arith.constant 0 : i32
    %c0_i32_0 = arith.constant 0 : i32
    %c0_i32_1 = arith.constant 0 : i32
    return %c0_i32, %c0_i32_0 : i32, i32
  }
  func.func @transform_5(%arg0: i32) -> (i32, i32, i32) {
    %c0_i32 = arith.constant 0 : i32
    %c0_i32_0 = arith.constant 0 : i32
    %c0_i32_1 = arith.constant 0 : i32
    return %arg0, %c0_i32, %c0_i32_0 : i32, i32, i32
  }
}

</mosaic_0001>

<llo_original>
// kernel: tpu_custom_call.1
$region0: #{tpu_custom_call.1}
  #allocation0 [shape = 'u32[]', space=smem, size = 0x4, offset = 0x4, fixed_abs, tag = 'smem constant byte address 0x4 - core index']
  #allocation1 [shape = 'u32[144,128]{1,0:T(1,128)}', space=vmem, size = 0x12000, scoped, tag = 'internal scratch']
  #allocation2 [shape = 'f32[8,32]{1,0:T(8,128)}', space=vmem, size = 0x1000, scoped, tag = 'scratch operand']
  %s0 = inlined_call_operand.hbm [shape: f32[10,8,24], index: 0, kind: input, shape index: {}]
  %s1 = inlined_call_operand.hbm [shape: f32[8,32], index: 1, kind: input, shape index: {}]
  %s2 = inlined_call_operand.hbm [shape: f32[10,8,32], index: 2, kind: input, shape index: {}]
  %s3 = inlined_call_operand.hbm [shape: f32[12,32,128], index: 3, kind: input, shape index: {}]
  %s4 = inlined_call_operand.hbm [shape: f32[8,128], index: 4, kind: input, shape index: {}]
  %s5 = inlined_call_operand.hbm [shape: f32[10,8,128], index: 5, kind: output, shape index: {}]
  %s6 = sld [smem:[#allocation0]]
  $region77: #{tpu_custom_call.1} parent=0
    _
  %s8 = ssub.s32 1, %s6
  %s9 = scalar_select 0, %s8, %s6
  $region1: #{tpu_custom_call.1} parent=0
    #allocation3 [shape = 'u8[8192]{0}', space=vmem, size = 0x2000, scoped, tag = 'input window, operand 0']
    #allocation4 [shape = 's32[2]{0}', space=sflag, size = 0x8, scoped, tag = 'scoped memory for tpu_custom_call.1']
    #allocation5 [shape = 's32[2]{0}', space=sflag, size = 0x8, scoped, tag = 'scoped memory for tpu_custom_call.1']
    #allocation6 [shape = 'u8[4096]{0}', space=vmem, size = 0x1000, scoped, tag = 'input window, operand 1, single buffered']
    #allocation7 [shape = 's32[1]{0}', space=sflag, size = 0x4, scoped, tag = 'scoped memory for tpu_custom_call.1']
    #allocation8 [shape = 'u8[40960]{0}', space=vmem, size = 0xa000, scoped, tag = 'input window, operand 2, single buffered']
    #allocation9 [shape = 'u8[196608]{0}', space=vmem, size = 0x30000, scoped, tag = 'input window, operand 3, single buffered']
    #allocation10 [shape = 's32[1]{0}', space=sflag, size = 0x4, scoped, tag = 'scoped memory for tpu_custom_call.1']
    #allocation11 [shape = 'u8[4096]{0}', space=vmem, size = 0x1000, scoped, tag = 'input window, operand 4, single buffered']
    #allocation12 [shape = 'u8[8192]{0}', space=vmem, size = 0x2000, scoped, tag = 'output window, operand 0']
    %10 = vsyncpa [#allocation4], 0
    %s11 = scalar_lea.sflag [#allocation4], 1
    %12 = vsyncpa %s11, 0
    %13 = vsyncpa [#allocation7], 0
    %14 = vsyncpa [#allocation10], 0
    %15 = vsyncpa [#allocation5], 0
    %s16 = scalar_lea.sflag [#allocation5], 1
    %17 = vsyncpa %s16, 0
    loop: start=0, step=1, limit=12
    $region2: #{tpu_custom_call.1} parent=1 // loop_pre_header
      _
    $region3: #{tpu_custom_call.1} parent=1 // loop_header
      %s19 = sphi 0, %s23
      %p20 = scmp.ge.s32.totalorder %s19, 12
      %s29 = sphi 0, %s31
      %s32 = sphi 0, %s29
      %s33 = sphi 0, %s32
      %s49 = sphi 0, %s33
      %s53 = sphi 0, %s53
      %s55 = sphi 0, %s53
      %s56 = sphi 0, %s55
      %s70 = sphi 0, %s56
      %s74 = sphi 0, %s74
      %s76 = sphi 0, %s74
      %s77 = sphi 0, %s76
      %s91 = sphi 0, %s77
      %s95 = sphi 0, %s95
      %s97 = sphi 0, %s95
      %s98 = sphi 0, %s97
      %s112 = sphi 0, %s98
      %s116 = sphi 0, %s116
      %s118 = sphi 0, %s116
      %s119 = sphi 0, %s118
      %s133 = sphi 0, %s119
      %s139 = sphi 0, %s141
      %s142 = sphi 0, %s139
      %s143 = sphi 0, %s142
      %s159 = sphi 0, %s143
    $region4: #{tpu_custom_call.1} parent=1 // loop_header_branch
      %22 = sbr.rel (%p20) target = $region8
    $region5: #{tpu_custom_call.1} parent=1 // loop_body
      %s24 = ssub.s32 %s19, 1
      %s25 = ssub.s32 %s19, 2
      %s26 = sadd.s32 %s19, 1
      %s27 = ssub.s32 %s19, %s26
      %p28 = scmp.eq.s32.totalorder %s27, 0
      %s30 = sadd.s32 %s29, 1
      %s31 = scalar_select %p28, %s29, %s30
      %p34 = pneg %p28
      %p35 = scmp.eq.s32.totalorder %s19, 9
      %p36 = por %p34, %p35
      %p37 = scmp.ne.s32.totalorder %s29, %s32
      %p38 = scmp.eq.s32.totalorder %s19, 0
      %p39 = por %p37, %p38
      %p40 = scmp.ne.s32.totalorder %s29, %s32
      %p41 = scmp.eq.s32.totalorder %s24, 9
      %p42 = por %p40, %p41
      %p43 = scmp.ne.s32.totalorder %s32, %s33
      %p44 = scmp.eq.s32.totalorder %s24, 0
      %p45 = por %p43, %p44
      %p46 = scmp.ne.s32.totalorder %s32, %s33
      %p47 = scmp.eq.s32.totalorder %s25, 9
      %p48 = por %p46, %p47
      %p50 = scmp.ne.s32.totalorder %s33, %s49
      %p51 = scmp.eq.s32.totalorder %s25, 0
      %p52 = por %p50, %p51
      %s54 = sadd.s32 %s53, 1
      %p57 = scmp.eq.s32.totalorder %s19, 9
      %p58 = scmp.ne.s32.totalorder %s53, %s55
      %p59 = scmp.eq.s32.totalorder %s19, 0
      %p60 = por %p58, %p59
      %p61 = scmp.ne.s32.totalorder %s53, %s55
      %p62 = scmp.eq.s32.totalorder %s24, 9
      %p63 = por %p61, %p62
      %p64 = scmp.ne.s32.totalorder %s55, %s56
      %p65 = scmp.eq.s32.totalorder %s24, 0
      %p66 = por %p64, %p65
      %p67 = scmp.ne.s32.totalorder %s55, %s56
      %p68 = scmp.eq.s32.totalorder %s25, 9
      %p69 = por %p67, %p68
      %p71 = scmp.ne.s32.totalorder %s56, %s70
      %p72 = scmp.eq.s32.totalorder %s25, 0
      %p73 = por %p71, %p72
      %s75 = sadd.s32 %s74, 1
      %p78 = scmp.eq.s32.totalorder %s19, 9
      %p79 = scmp.ne.s32.totalorder %s74, %s76
      %p80 = scmp.eq.s32.totalorder %s19, 0
      %p81 = por %p79, %p80
      %p82 = scmp.ne.s32.totalorder %s74, %s76
      %p83 = scmp.eq.s32.totalorder %s24, 9
      %p84 = por %p82, %p83
      %p85 = scmp.ne.s32.totalorder %s76, %s77
      %p86 = scmp.eq.s32.totalorder %s24, 0
      %p87 = por %p85, %p86
      %p88 = scmp.ne.s32.totalorder %s76, %s77
      %p89 = scmp.eq.s32.totalorder %s25, 9
      %p90 = por %p88, %p89
      %p92 = scmp.ne.s32.totalorder %s77, %s91
      %p93 = scmp.eq.s32.totalorder %s25, 0
      %p94 = por %p92, %p93
      %s96 = sadd.s32 %s95, 1
      %p99 = scmp.eq.s32.totalorder %s19, 9
      %p100 = scmp.ne.s32.totalorder %s95, %s97
      %p101 = scmp.eq.s32.totalorder %s19, 0
      %p102 = por %p100, %p101
      %p103 = scmp.ne.s32.totalorder %s95, %s97
      %p104 = scmp.eq.s32.totalorder %s24, 9
      %p105 = por %p103, %p104
      %p106 = scmp.ne.s32.totalorder %s97, %s98
      %p107 = scmp.eq.s32.totalorder %s24, 0
      %p108 = por %p106, %p107
      %p109 = scmp.ne.s32.totalorder %s97, %s98
      %p110 = scmp.eq.s32.totalorder %s25, 9
      %p111 = por %p109, %p110
      %p113 = scmp.ne.s32.totalorder %s98, %s112
      %p114 = scmp.eq.s32.totalorder %s25, 0
      %p115 = por %p113, %p114
      %s117 = sadd.s32 %s116, 1
      %p120 = scmp.eq.s32.totalorder %s19, 9
      %p121 = scmp.ne.s32.totalorder %s116, %s118
      %p122 = scmp.eq.s32.totalorder %s19, 0
      %p123 = por %p121, %p122
      %p124 = scmp.ne.s32.totalorder %s116, %s118
      %p125 = scmp.eq.s32.totalorder %s24, 9
      %p126 = por %p124, %p125
      %p127 = scmp.ne.s32.totalorder %s118, %s119
      %p128 = scmp.eq.s32.totalorder %s24, 0
      %p129 = por %p127, %p128
      %p130 = scmp.ne.s32.totalorder %s118, %s119
      %p131 = scmp.eq.s32.totalorder %s25, 9
      %p132 = por %p130, %p131
      %p134 = scmp.ne.s32.totalorder %s119, %s133
      %p135 = scmp.eq.s32.totalorder %s25, 0
      %p136 = por %p134, %p135
      %s137 = ssub.s32 %s19, %s26
      %p138 = scmp.eq.s32.totalorder %s137, 0
      %s140 = sadd.s32 %s139, 1
      %s141 = scalar_select %p138, %s139, %s140
      %p144 = pneg %p138
      %p145 = scmp.eq.s32.totalorder %s19, 9
      %p146 = por %p144, %p145
      %p147 = scmp.ne.s32.totalorder %s139, %s142
      %p148 = scmp.eq.s32.totalorder %s19, 0
      %p149 = por %p147, %p148
      %p150 = scmp.ne.s32.totalorder %s139, %s142
      %p151 = scmp.eq.s32.totalorder %s24, 9
      %p152 = por %p150, %p151
      %p153 = scmp.ne.s32.totalorder %s142, %s143
      %p154 = scmp.eq.s32.totalorder %s24, 0
      %p155 = por %p153, %p154
      %p156 = scmp.ne.s32.totalorder %s142, %s143
      %p157 = scmp.eq.s32.totalorder %s25, 9
      %p158 = por %p156, %p157
      %p160 = scmp.ne.s32.totalorder %s143, %s159
      %p161 = scmp.eq.s32.totalorder %s25, 0
      %p162 = por %p160, %p161
      %p163 = scmp.le.s32.totalorder 1, %s19
      %p164 = scmp.lt.s32.totalorder %s19, 11
      %p165 = pnand %p163, %p164
      %p166 = pneg %p165
      // Predicated region
      $region9: #{tpu_custom_call.1} parent=5 // pred_check
        _
      $region10: #{tpu_custom_call.1} parent=5 // pred_check_branch
        %168 = sbr.rel (%p165) target = $region12
      $region11: #{tpu_custom_call.1} parent=5 // pred_region
        %s169 = ssub.s32 %s19, 1
        // Predicated region
        $region13: #{tpu_custom_call.1} parent=11 // pred_check
          %p170 = pneg %p66
        $region14: #{tpu_custom_call.1} parent=11 // pred_check_branch
          %172 = sbr.rel (%p170) target = $region16
        $region15: #{tpu_custom_call.1} parent=11 // pred_region
          %s174 = ssub.s32 128, 128
          %175 = vsyncadd [#allocation7], %s174
          %s177 = sshll.u32 [#allocation6], 4
          %s178 = int_to_ptr.vmem [resolvable:$true] %s177
          %180 = dma.hbm_to_vmem [thread:$0]  %s1, 128, %s178, [#allocation7]
        $region16: #{tpu_custom_call.1} parent=11 // pred_fallthru
          _
        // Predicated region
        $region17: #{tpu_custom_call.1} parent=11 // pred_check
          %p181 = pneg %p87
        $region18: #{tpu_custom_call.1} parent=11 // pred_check_branch
          %183 = sbr.rel (%p181) target = $region20
        $region19: #{tpu_custom_call.1} parent=11 // pred_region
          %s185 = ssub.s32 1280, 1280
          %186 = vsyncadd [#allocation7], %s185
          %s187 = sshll.u32 [#allocation8], 4
          %s188 = int_to_ptr.vmem [resolvable:$true] %s187
          %193 = dma.hbm_to_vmem [thread:$0]  %s2, 1280, %s188, [#allocation7], 128, 128, 8
        $region20: #{tpu_custom_call.1} parent=11 // pred_fallthru
          _
        // Predicated region
        $region21: #{tpu_custom_call.1} parent=11 // pred_check
          %p194 = pneg %p108
        $region22: #{tpu_custom_call.1} parent=11 // pred_check_branch
          %196 = sbr.rel (%p194) target = $region24
        $region23: #{tpu_custom_call.1} parent=11 // pred_region
          %s198 = ssub.s32 6144, 6144
          %199 = vsyncadd [#allocation10], %s198
          %s200 = sshll.u32 [#allocation9], 4
          %s201 = int_to_ptr.vmem [resolvable:$true] %s200
          %206 = dma.hbm_to_vmem [thread:$0]  %s3, 6144, %s201, [#allocation10], 128, 128, 8
        $region24: #{tpu_custom_call.1} parent=11 // pred_fallthru
          _
        // Predicated region
        $region25: #{tpu_custom_call.1} parent=11 // pred_check
          %p207 = pneg %p129
        $region26: #{tpu_custom_call.1} parent=11 // pred_check_branch
          %209 = sbr.rel (%p207) target = $region28
        $region27: #{tpu_custom_call.1} parent=11 // pred_region
          %s211 = ssub.s32 128, 128
          %212 = vsyncadd [#allocation10], %s211
          %s214 = sshll.u32 [#allocation11], 4
          %s215 = int_to_ptr.vmem [resolvable:$true] %s214
          %217 = dma.hbm_to_vmem [thread:$0]  %s4, 128, %s215, [#allocation10]
        $region28: #{tpu_custom_call.1} parent=11 // pred_fallthru
          _
      $region12: #{tpu_custom_call.1} parent=5 // pred_fallthru
        _
      %p218 = scmp.lt.s32.totalorder %s19, 10
      // Predicated region
      $region29: #{tpu_custom_call.1} parent=5 // pred_check
        %p219 = pneg %p218
      $region30: #{tpu_custom_call.1} parent=5 // pred_check_branch
        %221 = sbr.rel (%p219) target = $region32
      $region31: #{tpu_custom_call.1} parent=5 // pred_region
        // Predicated region
        $region33: #{tpu_custom_call.1} parent=31 // pred_check
          %p222 = pneg %p39
        $region34: #{tpu_custom_call.1} parent=31 // pred_check_branch
          %224 = sbr.rel (%p222) target = $region36
        $region35: #{tpu_custom_call.1} parent=31 // pred_region
          %s225 = sand.u32 %s29, 1
          %s226 = scalar_lea.sflag [#allocation4], %s225
          %s227 = sand.u32 %s29, 1
          %s228 = smul.addr %s227, 8
          %s229 = scalar_lea.vmem [#allocation3], %s228
          %s231 = ssub.s32 128, 128
          %232 = vsyncadd %s226, %s231
          %s233 = smul.addr %s19, 128
          %s234 = scalar_lea.hbm %s0, %s233
          %s236 = sshll.u32 %s229, 4
          %s237 = int_to_ptr.vmem [resolvable:$true] %s236
          %239 = dma.hbm_to_vmem [thread:$0]  %s234, 128, %s237, %s226
        $region36: #{tpu_custom_call.1} parent=31 // pred_fallthru
          _
      $region32: #{tpu_custom_call.1} parent=5 // pred_fallthru
        _
      %p240 = scmp.le.s32.totalorder 1, %s19
      %p241 = scmp.lt.s32.totalorder %s19, 11
      %p242 = pnand %p240, %p241
      %p243 = pneg %p242
      // Predicated region
      $region37: #{tpu_custom_call.1} parent=5 // pred_check
        _
      $region38: #{tpu_custom_call.1} parent=5 // pred_check_branch
        %245 = sbr.rel (%p242) target = $region40
      $region39: #{tpu_custom_call.1} parent=5 // pred_region
        %s246 = ssub.s32 %s19, 1
        %s247 = sand.u32 %s32, 1
        %s248 = scalar_lea.sflag [#allocation4], %s247
        %s249 = sand.u32 %s32, 1
        %s250 = smul.addr %s249, 8
        %s251 = scalar_lea.vmem [#allocation3], %s250
        // Predicated region
        $region41: #{tpu_custom_call.1} parent=39 // pred_check
          %p252 = pneg %p45
        $region42: #{tpu_custom_call.1} parent=39 // pred_check_branch
          %254 = sbr.rel (%p252) target = $region44
        $region43: #{tpu_custom_call.1} parent=39 // pred_region
          %255 = dma.done %s248, 128
        $region44: #{tpu_custom_call.1} parent=39 // pred_fallthru
          _
        // Predicated region
        $region45: #{tpu_custom_call.1} parent=39 // pred_check
          %p256 = pneg %p66
        $region46: #{tpu_custom_call.1} parent=39 // pred_check_branch
          %258 = sbr.rel (%p256) target = $region48
        $region47: #{tpu_custom_call.1} parent=39 // pred_region
          %259 = dma.done [#allocation7], 128
        $region48: #{tpu_custom_call.1} parent=39 // pred_fallthru
          _
        // Predicated region
        $region49: #{tpu_custom_call.1} parent=39 // pred_check
          %p260 = pneg %p87
        $region50: #{tpu_custom_call.1} parent=39 // pred_check_branch
          %262 = sbr.rel (%p260) target = $region52
        $region51: #{tpu_custom_call.1} parent=39 // pred_region
          %263 = dma.done [#allocation7], 1280
        $region52: #{tpu_custom_call.1} parent=39 // pred_fallthru
          _
        // Predicated region
        $region53: #{tpu_custom_call.1} parent=39 // pred_check
          %p264 = pneg %p108
        $region54: #{tpu_custom_call.1} parent=39 // pred_check_branch
          %266 = sbr.rel (%p264) target = $region56
        $region55: #{tpu_custom_call.1} parent=39 // pred_region
          %267 = dma.done [#allocation10], 6144
        $region56: #{tpu_custom_call.1} parent=39 // pred_fallthru
          _
        // Predicated region
        $region57: #{tpu_custom_call.1} parent=39 // pred_check
          %p268 = pneg %p129
        $region58: #{tpu_custom_call.1} parent=39 // pred_check_branch
          %270 = sbr.rel (%p268) target = $region60
        $region59: #{tpu_custom_call.1} parent=39 // pred_region
          %271 = dma.done [#allocation10], 128
        $region60: #{tpu_custom_call.1} parent=39 // pred_fallthru
          _
        %s272 = sand.u32 %s32, 1
        %s273 = scalar_lea.sflag [#allocation4], %s272
        %s274 = sand.u32 %s32, 1
        %s275 = smul.addr %s274, 8
        %s276 = scalar_lea.vmem [#allocation3], %s275
        %p277 = pneg %p45
        %p278 = pneg %p42
        %p279 = pneg %p66
        %p280 = pneg %p63
        %p281 = pneg %p87
        %p282 = pneg %p84
        %p283 = pneg %p108
        %p284 = pneg %p105
        %p285 = pneg %p129
        %p286 = pneg %p126
        %p287 = pneg %p155
        %p288 = pneg %p152
        %s289 = sand.u32 %s142, 1
        %s290 = scalar_lea.sflag [#allocation5], %s289
        %s291 = sand.u32 %s142, 1
        %s292 = smul.addr %s291, 8
        %s293 = scalar_lea.vmem [#allocation12], %s292
        %p294 = scmp.eq.s32.totalorder %s24, 0
        // Predicated region
        $region61: #{tpu_custom_call.1} parent=39 // pred_check
          %p295 = pneg %p294
        $region62: #{tpu_custom_call.1} parent=39 // pred_check_branch
          %297 = sbr.rel (%p295) target = $region64
        $region63: #{tpu_custom_call.1} parent=39 // pred_region
          %v298 = vld [vmem:[#allocation6] sm:$0xff]
          %vm299 = vcmask 261120
          %300 = vst.msk [vmem:[#allocation2] sm:$0xff] %vm299, %v298
        $region64: #{tpu_custom_call.1} parent=39 // pred_fallthru
          _
        %v301 = vld [vmem:[#allocation2] sm:$0xff]
        %v302 = vld [vmem:[%s251] sm:$0xff]
        %v303 = vld [vmem:[#allocation9] sm:$0xff]
        %v304 = vld [vmem:[#allocation9 + $0x8] sm:$0xff]
        %v305 = vld [vmem:[#allocation9 + $0x10] sm:$0xff]
        %vm306 = vcmask 195584
        %v308 = vsel %vm306, %v302, 0
        %310 = vmatprep.subr.mxu0 0.0
        %311 = vmatpush1.msra.mxu0 0.0
        %312 = vmatprep.subr.mxu0 0.0
        %313 = vmatpush1.msra.mxu0 0.0
        %314 = vmatprep.subr.mxu0 0.0
        %315 = vmatpush1.msra.mxu0 0.0
        %316 = vmatprep.subr.mxu0 0.0
        %317 = vmatpush1.msra.mxu0 0.0
        %318 = vmatprep.subr.mxu0 0.0
        %319 = vmatpush1.msra.mxu0 0.0
        %320 = vmatprep.subr.mxu0 0.0
        %321 = vmatpush1.msra.mxu0 0.0
        %322 = vmatprep.subr.mxu0 0.0
        %323 = vmatpush1.msra.mxu0 0.0
        %324 = vmatprep.subr.mxu0 0.0
        %325 = vmatpush1.msra.mxu0 0.0
        %326 = vmatprep.subr.mxu0 0.0
        %327 = vmatpush1.msra.mxu0 0.0
        %328 = vmatprep.subr.mxu0 0.0
        %329 = vmatpush1.msra.mxu0 0.0
        %330 = vmatprep.subr.mxu0 0.0
        %331 = vmatpush1.msra.mxu0 0.0
        %332 = vmatprep.subr.mxu0 0.0
        %333 = vmatpush1.msra.mxu0 0.0
        %334 = vmatprep.subr.mxu0 0.0
        %335 = vmatpush1.msra.mxu0 0.0
        %336 = vmatprep.subr.mxu0 0.0
        %337 = vmatpush1.msra.mxu0 %v305
        %338 = vmatprep.subr.mxu0 0.0
        %339 = vmatpush1.msra.mxu0 %v304
        %340 = vmatprep.subr.mxu0 0.0
        %341 = vmatpush1.msra.mxu0 %v303
        %342 = vmatprep.subr.mxu0 0.0
        %343 = vmatpush2.msra.mxu0 0.0
        %344 = vmatprep.subr.mxu0 0.0
        %345 = vmatpush2.msra.mxu0 0.0
        %346 = vmatprep.subr.mxu0 0.0
        %347 = vmatpush2.msra.mxu0 0.0
        %348 = vmatprep.subr.mxu0 0.0
        %349 = vmatpush2.msra.mxu0 0.0
        %350 = vmatprep.subr.mxu0 0.0
        %351 = vmatpush2.msra.mxu0 0.0
        %352 = vmatprep.subr.mxu0 0.0
        %353 = vmatpush2.msra.mxu0 0.0
        %354 = vmatprep.subr.mxu0 0.0
        %355 = vmatpush2.msra.mxu0 0.0
        %356 = vmatprep.subr.mxu0 0.0
        %357 = vmatpush2.msra.mxu0 0.0
        %358 = vmatprep.subr.mxu0 0.0
        %359 = vmatpush2.msra.mxu0 0.0
        %360 = vmatprep.subr.mxu0 0.0
        %361 = vmatpush2.msra.mxu0 0.0
        %362 = vmatprep.subr.mxu0 0.0
        %363 = vmatpush2.msra.mxu0 0.0
        %364 = vmatprep.subr.mxu0 0.0
        %365 = vmatpush2.msra.mxu0 0.0
        %366 = vmatprep.subr.mxu0 0.0
        %367 = vmatpush2.msra.mxu0 0.0
        %368 = vmatprep.subr.mxu0 0.0
        %369 = vmatpush2.msra.mxu0 0.0
        %370 = vmatprep.subr.mxu0 0.0
        %371 = vmatpush2.msra.mxu0 0.0
        %372 = vmatprep.subr.mxu0 0.0
        %373 = vmatpush2.msra.mxu0 0.0
        %374 = vmatprep.mubr.f32.mxu0 0.0
        %375 = vmatmul.mubr.f32.gmra.mxu0 %v308
        %v376 = vpop.f32.mrf.mxu0
        %v377 = vadd.f32 0.0, %v376
        %v378 = vpop.f32.mrf.mxu0
        %379 = vdwg.mxu0
        %s380 = scalar_lea.vmem [#allocation9], 32
        %v381 = vld [vmem:[%s380] sm:$0xff]
        %v382 = vld [vmem:[%s380 + $0x8] sm:$0xff]
        %v383 = vld [vmem:[%s380 + $0x10] sm:$0xff]
        %v384 = vld [vmem:[%s380 + $0x18] sm:$0xff]
        %s385 = scalar_lea.vmem [#allocation9], 64
        %v386 = vld [vmem:[%s385] sm:$0xff]
        %v387 = vld [vmem:[%s385 + $0x8] sm:$0xff]
        %v388 = vld [vmem:[%s385 + $0x10] sm:$0xff]
        %v389 = vld [vmem:[%s385 + $0x18] sm:$0xff]
        %vm390 = vcmask 261120
        %v392 = vsel %vm390, %v301, 0
        %394 = vmatprep.subr.mxu0 0.0
        %395 = vmatpush1.msra.mxu0 0.0
        %396 = vmatprep.subr.mxu0 0.0
        %397 = vmatpush1.msra.mxu0 0.0
        %398 = vmatprep.subr.mxu0 0.0
        %399 = vmatpush1.msra.mxu0 0.0
        %400 = vmatprep.subr.mxu0 0.0
        %401 = vmatpush1.msra.mxu0 0.0
        %402 = vmatprep.subr.mxu0 0.0
        %403 = vmatpush1.msra.mxu0 0.0
        %404 = vmatprep.subr.mxu0 0.0
        %405 = vmatpush1.msra.mxu0 0.0
        %406 = vmatprep.subr.mxu0 0.0
        %407 = vmatpush1.msra.mxu0 0.0
        %408 = vmatprep.subr.mxu0 0.0
        %409 = vmatpush1.msra.mxu0 0.0
        %410 = vmatprep.subr.mxu0 0.0
        %411 = vmatpush1.msra.mxu0 0.0
        %412 = vmatprep.subr.mxu0 0.0
        %413 = vmatpush1.msra.mxu0 0.0
        %414 = vmatprep.subr.mxu0 0.0
        %415 = vmatpush1.msra.mxu0 0.0
        %416 = vmatprep.subr.mxu0 0.0
        %417 = vmatpush1.msra.mxu0 0.0
        %418 = vmatprep.subr.mxu0 0.0
        %419 = vmatpush1.msra.mxu0 %v389
        %420 = vmatprep.subr.mxu0 0.0
        %421 = vmatpush1.msra.mxu0 %v388
        %422 = vmatprep.subr.mxu0 0.0
        %423 = vmatpush1.msra.mxu0 %v387
        %424 = vmatprep.subr.mxu0 0.0
        %425 = vmatpush1.msra.mxu0 %v386
        %426 = vmatprep.subr.mxu0 0.0
        %427 = vmatpush2.msra.mxu0 0.0
        %428 = vmatprep.subr.mxu0 0.0
        %429 = vmatpush2.msra.mxu0 0.0
        %430 = vmatprep.subr.mxu0 0.0
        %431 = vmatpush2.msra.mxu0 0.0
        %432 = vmatprep.subr.mxu0 0.0
        %433 = vmatpush2.msra.mxu0 0.0
        %434 = vmatprep.subr.mxu0 0.0
        %435 = vmatpush2.msra.mxu0 0.0
        %436 = vmatprep.subr.mxu0 0.0
        %437 = vmatpush2.msra.mxu0 0.0
        %438 = vmatprep.subr.mxu0 0.0
        %439 = vmatpush2.msra.mxu0 0.0
        %440 = vmatprep.subr.mxu0 0.0
        %441 = vmatpush2.msra.mxu0 0.0
        %442 = vmatprep.subr.mxu0 0.0
        %443 = vmatpush2.msra.mxu0 0.0
        %444 = vmatprep.subr.mxu0 0.0
        %445 = vmatpush2.msra.mxu0 0.0
        %446 = vmatprep.subr.mxu0 0.0
        %447 = vmatpush2.msra.mxu0 0.0
        %448 = vmatprep.subr.mxu0 0.0
        %449 = vmatpush2.msra.mxu0 0.0
        %450 = vmatprep.subr.mxu0 0.0
        %451 = vmatpush2.msra.mxu0 0.0
        %452 = vmatprep.subr.mxu0 0.0
        %453 = vmatpush2.msra.mxu0 0.0
        %454 = vmatprep.subr.mxu0 0.0
        %455 = vmatpush2.msra.mxu0 0.0
        %456 = vmatprep.subr.mxu0 0.0
        %457 = vmatpush2.msra.mxu0 0.0
        %458 = vmatprep.mubr.f32.mxu0 0.0
        %459 = vmatmul.mubr.f32.gmra.mxu0 %v392
        %v460 = vpop.f32.mrf.mxu0
        %v461 = vadd.f32 0.0, %v460
        %v462 = vpop.f32.mrf.mxu0
        %463 = vdwg.mxu0
        %v465 = vsel %vm390, %v377, 0
        %467 = vmatprep.subr.mxu0 0.0
        %468 = vmatpush1.msra.mxu0 0.0
        %469 = vmatprep.subr.mxu0 0.0
        %470 = vmatpush1.msra.mxu0 0.0
        %471 = vmatprep.subr.mxu0 0.0
        %472 = vmatpush1.msra.mxu0 0.0
        %473 = vmatprep.subr.mxu0 0.0
        %474 = vmatpush1.msra.mxu0 0.0
        %475 = vmatprep.subr.mxu0 0.0
        %476 = vmatpush1.msra.mxu0 0.0
        %477 = vmatprep.subr.mxu0 0.0
        %478 = vmatpush1.msra.mxu0 0.0
        %479 = vmatprep.subr.mxu0 0.0
        %480 = vmatpush1.msra.mxu0 0.0
        %481 = vmatprep.subr.mxu0 0.0
        %482 = vmatpush1.msra.mxu0 0.0
        %483 = vmatprep.subr.mxu0 0.0
        %484 = vmatpush1.msra.mxu0 0.0
        %485 = vmatprep.subr.mxu0 0.0
        %486 = vmatpush1.msra.mxu0 0.0
        %487 = vmatprep.subr.mxu0 0.0
        %488 = vmatpush1.msra.mxu0 0.0
        %489 = vmatprep.subr.mxu0 0.0
        %490 = vmatpush1.msra.mxu0 0.0
        %491 = vmatprep.subr.mxu0 0.0
        %492 = vmatpush1.msra.mxu0 %v384
        %493 = vmatprep.subr.mxu0 0.0
        %494 = vmatpush1.msra.mxu0 %v383
        %495 = vmatprep.subr.mxu0 0.0
        %496 = vmatpush1.msra.mxu0 %v382
        %497 = vmatprep.subr.mxu0 0.0
        %498 = vmatpush1.msra.mxu0 %v381
        %499 = vmatprep.subr.mxu0 0.0
        %500 = vmatpush2.msra.mxu0 0.0
        %501 = vmatprep.subr.mxu0 0.0
        %502 = vmatpush2.msra.mxu0 0.0
        %503 = vmatprep.subr.mxu0 0.0
        %504 = vmatpush2.msra.mxu0 0.0
        %505 = vmatprep.subr.mxu0 0.0
        %506 = vmatpush2.msra.mxu0 0.0
        %507 = vmatprep.subr.mxu0 0.0
        %508 = vmatpush2.msra.mxu0 0.0
        %509 = vmatprep.subr.mxu0 0.0
        %510 = vmatpush2.msra.mxu0 0.0
        %511 = vmatprep.subr.mxu0 0.0
        %512 = vmatpush2.msra.mxu0 0.0
        %513 = vmatprep.subr.mxu0 0.0
        %514 = vmatpush2.msra.mxu0 0.0
        %515 = vmatprep.subr.mxu0 0.0
        %516 = vmatpush2.msra.mxu0 0.0
        %517 = vmatprep.subr.mxu0 0.0
        %518 = vmatpush2.msra.mxu0 0.0
        %519 = vmatprep.subr.mxu0 0.0
        %520 = vmatpush2.msra.mxu0 0.0
        %521 = vmatprep.subr.mxu0 0.0
        %522 = vmatpush2.msra.mxu0 0.0
        %523 = vmatprep.subr.mxu0 0.0
        %524 = vmatpush2.msra.mxu0 0.0
        %525 = vmatprep.subr.mxu0 0.0
        %526 = vmatpush2.msra.mxu0 0.0
        %527 = vmatprep.subr.mxu0 0.0
        %528 = vmatpush2.msra.mxu0 0.0
        %529 = vmatprep.subr.mxu0 0.0
        %530 = vmatpush2.msra.mxu0 0.0
        %531 = vmatprep.mubr.f32.mxu0 0.0
        %532 = vmatmul.mubr.f32.gmra.mxu0 %v465
        %v533 = vpop.f32.mrf.mxu0
        %v534 = vadd.f32 %v461, %v533
        %v535 = vpop.f32.mrf.mxu0
        %536 = vdwg.mxu0
        %v537 = vld [vmem:[#allocation11] sm:$0x1]
        %v538 = vlaneseq
        %v539 = vshrl.u32 %v538, 7
        %v540 = vsub.s32 0, %v539
        %v541 = vrot.slane %v537, %v540
        %v542 = vadd.f32 %v534, %v541
        %vm543 = vcmask 80896
        %v544 = vsel %vm543, %v542, -inf
        %545 = vmax.xlane.f32.xlu0 %v544
        %v546 = vpop.xlane.xlu0 %545
        %v547 = vsub.f32 %v542, %v546
        %v548 = vmul.f32 %v547, 1.442695
        %v549 = vpow.pop %v548
        %v550 = vsel %vm543, %v549, 0.0
        %551 = vadd.xlane.f32.xlu0 %v550
        %v552 = vpop.xlane.xlu0 %551
        %v553 = vrcp.pop %v552
        %v554 = vmul.f32 %v549, %v553
        %v555 = vld [vmem:[#allocation8] sm:$0xff]
        %557 = vset.pattern.permute.xlu0 0
        %558 = vperm.xlu0 %557, %v554
        %v559 = vpop.permute.xlu0 %558
        %v561 = vmul.f32 %v559, %v555
        %v562 = vadd.f32 %v561, 0.0
        %s563 = scalar_lea.vmem [#allocation8], 8
        %v564 = vld [vmem:[%s563] sm:$0xff]
        %565 = vset.pattern.permute.xlu0 1
        %566 = vperm.xlu0 %565, %v554
        %v567 = vpop.permute.xlu0 %566
        %v569 = vmul.f32 %v567, %v564
        %v570 = vadd.f32 %v562, %v569
        %s571 = scalar_lea.vmem [#allocation8], 16
        %v572 = vld [vmem:[%s571] sm:$0xff]
        %573 = vset.pattern.permute.xlu0 2
        %574 = vperm.xlu0 %573, %v554
        %v575 = vpop.permute.xlu0 %574
        %v577 = vmul.f32 %v575, %v572
        %v578 = vadd.f32 %v570, %v577
        %s579 = scalar_lea.vmem [#allocation8], 24
        %v580 = vld [vmem:[%s579] sm:$0xff]
        %581 = vset.pattern.permute.xlu0 3
        %582 = vperm.xlu0 %581, %v554
        %v583 = vpop.permute.xlu0 %582
        %v585 = vmul.f32 %v583, %v580
        %v586 = vadd.f32 %v578, %v585
        %s587 = scalar_lea.vmem [#allocation8], 32
        %v588 = vld [vmem:[%s587] sm:$0xff]
        %589 = vset.pattern.permute.xlu0 4
        %590 = vperm.xlu0 %589, %v554
        %v591 = vpop.permute.xlu0 %590
        %v593 = vmul.f32 %v591, %v588
        %v594 = vadd.f32 %v586, %v593
        %s595 = scalar_lea.vmem [#allocation8], 40
        %v596 = vld [vmem:[%s595] sm:$0xff]
        %597 = vset.pattern.permute.xlu0 5
        %598 = vperm.xlu0 %597, %v554
        %v599 = vpop.permute.xlu0 %598
        %v601 = vmul.f32 %v599, %v596
        %v602 = vadd.f32 %v594, %v601
        %s603 = scalar_lea.vmem [#allocation8], 48
        %v604 = vld [vmem:[%s603] sm:$0xff]
        %605 = vset.pattern.permute.xlu0 6
        %606 = vperm.xlu0 %605, %v554
        %v607 = vpop.permute.xlu0 %606
        %v609 = vmul.f32 %v607, %v604
        %v610 = vadd.f32 %v602, %v609
        %s611 = scalar_lea.vmem [#allocation8], 56
        %v612 = vld [vmem:[%s611] sm:$0xff]
        %613 = vset.pattern.permute.xlu0 7
        %614 = vperm.xlu0 %613, %v554
        %v615 = vpop.permute.xlu0 %614
        %v617 = vmul.f32 %v615, %v612
        %v618 = vadd.f32 %v610, %v617
        %s619 = scalar_lea.vmem [#allocation8], 64
        %v620 = vld [vmem:[%s619] sm:$0xff]
        %621 = vset.pattern.permute.xlu0 8
        %622 = vperm.xlu0 %621, %v554
        %v623 = vpop.permute.xlu0 %622
        %v625 = vmul.f32 %v623, %v620
        %v626 = vadd.f32 %v618, %v625
        %s627 = scalar_lea.vmem [#allocation8], 72
        %v628 = vld [vmem:[%s627] sm:$0xff]
        %629 = vset.pattern.permute.xlu0 9
        %630 = vperm.xlu0 %629, %v554
        %v631 = vpop.permute.xlu0 %630
        %v633 = vmul.f32 %v631, %v628
        %v634 = vadd.f32 %v626, %v633
        %s635 = scalar_lea.vmem [#allocation9], 96
        %v636 = vld [vmem:[%s635] sm:$0xff]
        %v637 = vld [vmem:[%s635 + $0x8] sm:$0xff]
        %v638 = vld [vmem:[%s635 + $0x10] sm:$0xff]
        %v639 = vld [vmem:[%s635 + $0x18] sm:$0xff]
        %s640 = scalar_lea.vmem [#allocation9], 128
        %v641 = vld [vmem:[%s640] sm:$0xff]
        %v642 = vld [vmem:[%s640 + $0x8] sm:$0xff]
        %v643 = vld [vmem:[%s640 + $0x10] sm:$0xff]
        %v644 = vld [vmem:[%s640 + $0x18] sm:$0xff]
        %v646 = vsel %vm390, %v634, 0
        %648 = vmatprep.subr.mxu0 0.0
        %649 = vmatpush1.msra.mxu0 0.0
        %650 = vmatprep.subr.mxu0 0.0
        %651 = vmatpush1.msra.mxu0 0.0
        %652 = vmatprep.subr.mxu0 0.0
        %653 = vmatpush1.msra.mxu0 0.0
        %654 = vmatprep.subr.mxu0 0.0
        %655 = vmatpush1.msra.mxu0 0.0
        %656 = vmatprep.subr.mxu0 0.0
        %657 = vmatpush1.msra.mxu0 0.0
        %658 = vmatprep.subr.mxu0 0.0
        %659 = vmatpush1.msra.mxu0 0.0
        %660 = vmatprep.subr.mxu0 0.0
        %661 = vmatpush1.msra.mxu0 0.0
        %662 = vmatprep.subr.mxu0 0.0
        %663 = vmatpush1.msra.mxu0 0.0
        %664 = vmatprep.subr.mxu0 0.0
        %665 = vmatpush1.msra.mxu0 0.0
        %666 = vmatprep.subr.mxu0 0.0
        %667 = vmatpush1.msra.mxu0 0.0
        %668 = vmatprep.subr.mxu0 0.0
        %669 = vmatpush1.msra.mxu0 0.0
        %670 = vmatprep.subr.mxu0 0.0
        %671 = vmatpush1.msra.mxu0 0.0
        %672 = vmatprep.subr.mxu0 0.0
        %673 = vmatpush1.msra.mxu0 %v644
        %674 = vmatprep.subr.mxu0 0.0
        %675 = vmatpush1.msra.mxu0 %v643
        %676 = vmatprep.subr.mxu0 0.0
        %677 = vmatpush1.msra.mxu0 %v642
        %678 = vmatprep.subr.mxu0 0.0
        %679 = vmatpush1.msra.mxu0 %v641
        %680 = vmatprep.subr.mxu0 0.0
        %681 = vmatpush2.msra.mxu0 0.0
        %682 = vmatprep.subr.mxu0 0.0
        %683 = vmatpush2.msra.mxu0 0.0
        %684 = vmatprep.subr.mxu0 0.0
        %685 = vmatpush2.msra.mxu0 0.0
        %686 = vmatprep.subr.mxu0 0.0
        %687 = vmatpush2.msra.mxu0 0.0
        %688 = vmatprep.subr.mxu0 0.0
        %689 = vmatpush2.msra.mxu0 0.0
        %690 = vmatprep.subr.mxu0 0.0
        %691 = vmatpush2.msra.mxu0 0.0
        %692 = vmatprep.subr.mxu0 0.0
        %693 = vmatpush2.msra.mxu0 0.0
        %694 = vmatprep.subr.mxu0 0.0
        %695 = vmatpush2.msra.mxu0 0.0
        %696 = vmatprep.subr.mxu0 0.0
        %697 = vmatpush2.msra.mxu0 0.0
        %698 = vmatprep.subr.mxu0 0.0
        %699 = vmatpush2.msra.mxu0 0.0
        %700 = vmatprep.subr.mxu0 0.0
        %701 = vmatpush2.msra.mxu0 0.0
        %702 = vmatprep.subr.mxu0 0.0
        %703 = vmatpush2.msra.mxu0 0.0
        %704 = vmatprep.subr.mxu0 0.0
        %705 = vmatpush2.msra.mxu0 0.0
        %706 = vmatprep.subr.mxu0 0.0
        %707 = vmatpush2.msra.mxu0 0.0
        %708 = vmatprep.subr.mxu0 0.0
        %709 = vmatpush2.msra.mxu0 0.0
        %710 = vmatprep.subr.mxu0 0.0
        %711 = vmatpush2.msra.mxu0 0.0
        %712 = vmatprep.mubr.f32.mxu0 0.0
        %713 = vmatmul.mubr.f32.gmra.mxu0 %v646
        %v714 = vpop.f32.mrf.mxu0
        %v715 = vadd.f32 0.0, %v714
        %v716 = vpop.f32.mrf.mxu0
        %717 = vdwg.mxu0
        %718 = vmatprep.subr.mxu0 0.0
        %719 = vmatpush1.msra.mxu0 0.0
        %720 = vmatprep.subr.mxu0 0.0
        %721 = vmatpush1.msra.mxu0 0.0
        %722 = vmatprep.subr.mxu0 0.0
        %723 = vmatpush1.msra.mxu0 0.0
        %724 = vmatprep.subr.mxu0 0.0
        %725 = vmatpush1.msra.mxu0 0.0
        %726 = vmatprep.subr.mxu0 0.0
        %727 = vmatpush1.msra.mxu0 0.0
        %728 = vmatprep.subr.mxu0 0.0
        %729 = vmatpush1.msra.mxu0 0.0
        %730 = vmatprep.subr.mxu0 0.0
        %731 = vmatpush1.msra.mxu0 0.0
        %732 = vmatprep.subr.mxu0 0.0
        %733 = vmatpush1.msra.mxu0 0.0
        %734 = vmatprep.subr.mxu0 0.0
        %735 = vmatpush1.msra.mxu0 0.0
        %736 = vmatprep.subr.mxu0 0.0
        %737 = vmatpush1.msra.mxu0 0.0
        %738 = vmatprep.subr.mxu0 0.0
        %739 = vmatpush1.msra.mxu0 0.0
        %740 = vmatprep.subr.mxu0 0.0
        %741 = vmatpush1.msra.mxu0 0.0
        %742 = vmatprep.subr.mxu0 0.0
        %743 = vmatpush1.msra.mxu0 %v639
        %744 = vmatprep.subr.mxu0 0.0
        %745 = vmatpush1.msra.mxu0 %v638
        %746 = vmatprep.subr.mxu0 0.0
        %747 = vmatpush1.msra.mxu0 %v637
        %748 = vmatprep.subr.mxu0 0.0
        %749 = vmatpush1.msra.mxu0 %v636
        %750 = vmatprep.subr.mxu0 0.0
        %751 = vmatpush2.msra.mxu0 0.0
        %752 = vmatprep.subr.mxu0 0.0
        %753 = vmatpush2.msra.mxu0 0.0
        %754 = vmatprep.subr.mxu0 0.0
        %755 = vmatpush2.msra.mxu0 0.0
        %756 = vmatprep.subr.mxu0 0.0
        %757 = vmatpush2.msra.mxu0 0.0
        %758 = vmatprep.subr.mxu0 0.0
        %759 = vmatpush2.msra.mxu0 0.0
        %760 = vmatprep.subr.mxu0 0.0
        %761 = vmatpush2.msra.mxu0 0.0
        %762 = vmatprep.subr.mxu0 0.0
        %763 = vmatpush2.msra.mxu0 0.0
        %764 = vmatprep.subr.mxu0 0.0
        %765 = vmatpush2.msra.mxu0 0.0
        %766 = vmatprep.subr.mxu0 0.0
        %767 = vmatpush2.msra.mxu0 0.0
        %768 = vmatprep.subr.mxu0 0.0
        %769 = vmatpush2.msra.mxu0 0.0
        %770 = vmatprep.subr.mxu0 0.0
        %771 = vmatpush2.msra.mxu0 0.0
        %772 = vmatprep.subr.mxu0 0.0
        %773 = vmatpush2.msra.mxu0 0.0
        %774 = vmatprep.subr.mxu0 0.0
        %775 = vmatpush2.msra.mxu0 0.0
        %776 = vmatprep.subr.mxu0 0.0
        %777 = vmatpush2.msra.mxu0 0.0
        %778 = vmatprep.subr.mxu0 0.0
        %779 = vmatpush2.msra.mxu0 0.0
        %780 = vmatprep.subr.mxu0 0.0
        %781 = vmatpush2.msra.mxu0 0.0
        %782 = vmatprep.mubr.f32.mxu0 0.0
        %783 = vmatmul.mubr.f32.gmra.mxu0 %v465
        %v784 = vpop.f32.mrf.mxu0
        %v785 = vadd.f32 %v715, %v784
        %v786 = vpop.f32.mrf.mxu0
        %787 = vdwg.mxu0
        %v788 = vld [vmem:[#allocation11 + $0x1] sm:$0x1]
        %v789 = vlaneseq
        %v790 = vshrl.u32 %v789, 7
        %v791 = vsub.s32 0, %v790
        %v792 = vrot.slane %v788, %v791
        %v793 = vadd.f32 %v785, %v792
        %v794 = vmax.f32 %v793, 0.0
        %s795 = scalar_lea.vmem [#allocation9], 160
        %v796 = vld [vmem:[%s795] sm:$0xff]
        %v797 = vld [vmem:[%s795 + $0x8] sm:$0xff]
        %v798 = vld [vmem:[%s795 + $0x10] sm:$0xff]
        %v799 = vld [vmem:[%s795 + $0x18] sm:$0xff]
        %s800 = scalar_lea.vmem [#allocation9], 192
        %v801 = vld [vmem:[%s800] sm:$0xff]
        %v802 = vld [vmem:[%s800 + $0x8] sm:$0xff]
        %v803 = vld [vmem:[%s800 + $0x10] sm:$0xff]
        %v804 = vld [vmem:[%s800 + $0x18] sm:$0xff]
        %805 = vmatprep.subr.mxu0 0.0
        %806 = vmatpush1.msra.mxu0 0.0
        %807 = vmatprep.subr.mxu0 0.0
        %808 = vmatpush1.msra.mxu0 0.0
        %809 = vmatprep.subr.mxu0 0.0
        %810 = vmatpush1.msra.mxu0 0.0
        %811 = vmatprep.subr.mxu0 0.0
        %812 = vmatpush1.msra.mxu0 0.0
        %813 = vmatprep.subr.mxu0 0.0
        %814 = vmatpush1.msra.mxu0 0.0
        %815 = vmatprep.subr.mxu0 0.0
        %816 = vmatpush1.msra.mxu0 0.0
        %817 = vmatprep.subr.mxu0 0.0
        %818 = vmatpush1.msra.mxu0 0.0
        %819 = vmatprep.subr.mxu0 0.0
        %820 = vmatpush1.msra.mxu0 0.0
        %821 = vmatprep.subr.mxu0 0.0
        %822 = vmatpush1.msra.mxu0 0.0
        %823 = vmatprep.subr.mxu0 0.0
        %824 = vmatpush1.msra.mxu0 0.0
        %825 = vmatprep.subr.mxu0 0.0
        %826 = vmatpush1.msra.mxu0 0.0
        %827 = vmatprep.subr.mxu0 0.0
        %828 = vmatpush1.msra.mxu0 0.0
        %829 = vmatprep.subr.mxu0 0.0
        %830 = vmatpush1.msra.mxu0 %v804
        %831 = vmatprep.subr.mxu0 0.0
        %832 = vmatpush1.msra.mxu0 %v803
        %833 = vmatprep.subr.mxu0 0.0
        %834 = vmatpush1.msra.mxu0 %v802
        %835 = vmatprep.subr.mxu0 0.0
        %836 = vmatpush1.msra.mxu0 %v801
        %837 = vmatprep.subr.mxu0 0.0
        %838 = vmatpush2.msra.mxu0 0.0
        %839 = vmatprep.subr.mxu0 0.0
        %840 = vmatpush2.msra.mxu0 0.0
        %841 = vmatprep.subr.mxu0 0.0
        %842 = vmatpush2.msra.mxu0 0.0
        %843 = vmatprep.subr.mxu0 0.0
        %844 = vmatpush2.msra.mxu0 0.0
        %845 = vmatprep.subr.mxu0 0.0
        %846 = vmatpush2.msra.mxu0 0.0
        %847 = vmatprep.subr.mxu0 0.0
        %848 = vmatpush2.msra.mxu0 0.0
        %849 = vmatprep.subr.mxu0 0.0
        %850 = vmatpush2.msra.mxu0 0.0
        %851 = vmatprep.subr.mxu0 0.0
        %852 = vmatpush2.msra.mxu0 0.0
        %853 = vmatprep.subr.mxu0 0.0
        %854 = vmatpush2.msra.mxu0 0.0
        %855 = vmatprep.subr.mxu0 0.0
        %856 = vmatpush2.msra.mxu0 0.0
        %857 = vmatprep.subr.mxu0 0.0
        %858 = vmatpush2.msra.mxu0 0.0
        %859 = vmatprep.subr.mxu0 0.0
        %860 = vmatpush2.msra.mxu0 0.0
        %861 = vmatprep.subr.mxu0 0.0
        %862 = vmatpush2.msra.mxu0 0.0
        %863 = vmatprep.subr.mxu0 0.0
        %864 = vmatpush2.msra.mxu0 0.0
        %865 = vmatprep.subr.mxu0 0.0
        %866 = vmatpush2.msra.mxu0 0.0
        %867 = vmatprep.subr.mxu0 0.0
        %868 = vmatpush2.msra.mxu0 0.0
        %869 = vmatprep.mubr.f32.mxu0 0.0
        %870 = vmatmul.mubr.f32.gmra.mxu0 %v392
        %v871 = vpop.f32.mrf.mxu0
        %v872 = vadd.f32 0.0, %v871
        %v873 = vpop.f32.mrf.mxu0
        %874 = vdwg.mxu0
        %v876 = vsel %vm390, %v794, 0
        %878 = vmatprep.subr.mxu0 0.0
        %879 = vmatpush1.msra.mxu0 0.0
        %880 = vmatprep.subr.mxu0 0.0
        %881 = vmatpush1.msra.mxu0 0.0
        %882 = vmatprep.subr.mxu0 0.0
        %883 = vmatpush1.msra.mxu0 0.0
        %884 = vmatprep.subr.mxu0 0.0
        %885 = vmatpush1.msra.mxu0 0.0
        %886 = vmatprep.subr.mxu0 0.0
        %887 = vmatpush1.msra.mxu0 0.0
        %888 = vmatprep.subr.mxu0 0.0
        %889 = vmatpush1.msra.mxu0 0.0
        %890 = vmatprep.subr.mxu0 0.0
        %891 = vmatpush1.msra.mxu0 0.0
        %892 = vmatprep.subr.mxu0 0.0
        %893 = vmatpush1.msra.mxu0 0.0
        %894 = vmatprep.subr.mxu0 0.0
        %895 = vmatpush1.msra.mxu0 0.0
        %896 = vmatprep.subr.mxu0 0.0
        %897 = vmatpush1.msra.mxu0 0.0
        %898 = vmatprep.subr.mxu0 0.0
        %899 = vmatpush1.msra.mxu0 0.0
        %900 = vmatprep.subr.mxu0 0.0
        %901 = vmatpush1.msra.mxu0 0.0
        %902 = vmatprep.subr.mxu0 0.0
        %903 = vmatpush1.msra.mxu0 %v799
        %904 = vmatprep.subr.mxu0 0.0
        %905 = vmatpush1.msra.mxu0 %v798
        %906 = vmatprep.subr.mxu0 0.0
        %907 = vmatpush1.msra.mxu0 %v797
        %908 = vmatprep.subr.mxu0 0.0
        %909 = vmatpush1.msra.mxu0 %v796
        %910 = vmatprep.subr.mxu0 0.0
        %911 = vmatpush2.msra.mxu0 0.0
        %912 = vmatprep.subr.mxu0 0.0
        %913 = vmatpush2.msra.mxu0 0.0
        %914 = vmatprep.subr.mxu0 0.0
        %915 = vmatpush2.msra.mxu0 0.0
        %916 = vmatprep.subr.mxu0 0.0
        %917 = vmatpush2.msra.mxu0 0.0
        %918 = vmatprep.subr.mxu0 0.0
        %919 = vmatpush2.msra.mxu0 0.0
        %920 = vmatprep.subr.mxu0 0.0
        %921 = vmatpush2.msra.mxu0 0.0
        %922 = vmatprep.subr.mxu0 0.0
        %923 = vmatpush2.msra.mxu0 0.0
        %924 = vmatprep.subr.mxu0 0.0
        %925 = vmatpush2.msra.mxu0 0.0
        %926 = vmatprep.subr.mxu0 0.0
        %927 = vmatpush2.msra.mxu0 0.0
        %928 = vmatprep.subr.mxu0 0.0
        %929 = vmatpush2.msra.mxu0 0.0
        %930 = vmatprep.subr.mxu0 0.0
        %931 = vmatpush2.msra.mxu0 0.0
        %932 = vmatprep.subr.mxu0 0.0
        %933 = vmatpush2.msra.mxu0 0.0
        %934 = vmatprep.subr.mxu0 0.0
        %935 = vmatpush2.msra.mxu0 0.0
        %936 = vmatprep.subr.mxu0 0.0
        %937 = vmatpush2.msra.mxu0 0.0
        %938 = vmatprep.subr.mxu0 0.0
        %939 = vmatpush2.msra.mxu0 0.0
        %940 = vmatprep.subr.mxu0 0.0
        %941 = vmatpush2.msra.mxu0 0.0
        %942 = vmatprep.mubr.f32.mxu0 0.0
        %943 = vmatmul.mubr.f32.gmra.mxu0 %v876
        %v944 = vpop.f32.mrf.mxu0
        %v945 = vadd.f32 %v872, %v944
        %v946 = vpop.f32.mrf.mxu0
        %947 = vdwg.mxu0
        %v948 = vld [vmem:[#allocation11 + $0x2] sm:$0x1]
        %v949 = vlaneseq
        %v950 = vshrl.u32 %v949, 7
        %v951 = vsub.s32 0, %v950
        %v952 = vrot.slane %v948, %v951
        %v953 = vadd.f32 %v945, %v952
        %v954 = vxor.u32 %v953, 2147483648
        %v955 = vmul.f32 %v954, 1.442695
        %v956 = vpow.pop %v955
        %v957 = vadd.f32 %v956, 1.0
        %v958 = vrcp.pop %v957
        %v959 = vmul.f32 1.0, %v958
        %s960 = scalar_lea.vmem [#allocation9], 224
        %v961 = vld [vmem:[%s960] sm:$0xff]
        %v962 = vld [vmem:[%s960 + $0x8] sm:$0xff]
        %v963 = vld [vmem:[%s960 + $0x10] sm:$0xff]
        %v964 = vld [vmem:[%s960 + $0x18] sm:$0xff]
        %s965 = scalar_lea.vmem [#allocation9], 256
        %v966 = vld [vmem:[%s965] sm:$0xff]
        %v967 = vld [vmem:[%s965 + $0x8] sm:$0xff]
        %v968 = vld [vmem:[%s965 + $0x10] sm:$0xff]
        %v969 = vld [vmem:[%s965 + $0x18] sm:$0xff]
        %970 = vmatprep.subr.mxu0 0.0
        %971 = vmatpush1.msra.mxu0 0.0
        %972 = vmatprep.subr.mxu0 0.0
        %973 = vmatpush1.msra.mxu0 0.0
        %974 = vmatprep.subr.mxu0 0.0
        %975 = vmatpush1.msra.mxu0 0.0
        %976 = vmatprep.subr.mxu0 0.0
        %977 = vmatpush1.msra.mxu0 0.0
        %978 = vmatprep.subr.mxu0 0.0
        %979 = vmatpush1.msra.mxu0 0.0
        %980 = vmatprep.subr.mxu0 0.0
        %981 = vmatpush1.msra.mxu0 0.0
        %982 = vmatprep.subr.mxu0 0.0
        %983 = vmatpush1.msra.mxu0 0.0
        %984 = vmatprep.subr.mxu0 0.0
        %985 = vmatpush1.msra.mxu0 0.0
        %986 = vmatprep.subr.mxu0 0.0
        %987 = vmatpush1.msra.mxu0 0.0
        %988 = vmatprep.subr.mxu0 0.0
        %989 = vmatpush1.msra.mxu0 0.0
        %990 = vmatprep.subr.mxu0 0.0
        %991 = vmatpush1.msra.mxu0 0.0
        %992 = vmatprep.subr.mxu0 0.0
        %993 = vmatpush1.msra.mxu0 0.0
        %994 = vmatprep.subr.mxu0 0.0
        %995 = vmatpush1.msra.mxu0 %v969
        %996 = vmatprep.subr.mxu0 0.0
        %997 = vmatpush1.msra.mxu0 %v968
        %998 = vmatprep.subr.mxu0 0.0
        %999 = vmatpush1.msra.mxu0 %v967
        %1000 = vmatprep.subr.mxu0 0.0
        %1001 = vmatpush1.msra.mxu0 %v966
        %1002 = vmatprep.subr.mxu0 0.0
        %1003 = vmatpush2.msra.mxu0 0.0
        %1004 = vmatprep.subr.mxu0 0.0
        %1005 = vmatpush2.msra.mxu0 0.0
        %1006 = vmatprep.subr.mxu0 0.0
        %1007 = vmatpush2.msra.mxu0 0.0
        %1008 = vmatprep.subr.mxu0 0.0
        %1009 = vmatpush2.msra.mxu0 0.0
        %1010 = vmatprep.subr.mxu0 0.0
        %1011 = vmatpush2.msra.mxu0 0.0
        %1012 = vmatprep.subr.mxu0 0.0
        %1013 = vmatpush2.msra.mxu0 0.0
        %1014 = vmatprep.subr.mxu0 0.0
        %1015 = vmatpush2.msra.mxu0 0.0
        %1016 = vmatprep.subr.mxu0 0.0
        %1017 = vmatpush2.msra.mxu0 0.0
        %1018 = vmatprep.subr.mxu0 0.0
        %1019 = vmatpush2.msra.mxu0 0.0
        %1020 = vmatprep.subr.mxu0 0.0
        %1021 = vmatpush2.msra.mxu0 0.0
        %1022 = vmatprep.subr.mxu0 0.0
        %1023 = vmatpush2.msra.mxu0 0.0
        %1024 = vmatprep.subr.mxu0 0.0
        %1025 = vmatpush2.msra.mxu0 0.0
        %1026 = vmatprep.subr.mxu0 0.0
        %1027 = vmatpush2.msra.mxu0 0.0
        %1028 = vmatprep.subr.mxu0 0.0
        %1029 = vmatpush2.msra.mxu0 0.0
        %1030 = vmatprep.subr.mxu0 0.0
        %1031 = vmatpush2.msra.mxu0 0.0
        %1032 = vmatprep.subr.mxu0 0.0
        %1033 = vmatpush2.msra.mxu0 0.0
        %1034 = vmatprep.mubr.f32.mxu0 0.0
        %1035 = vmatmul.mubr.f32.gmra.mxu0 %v392
        %v1036 = vpop.f32.mrf.mxu0
        %v1037 = vadd.f32 0.0, %v1036
        %v1038 = vpop.f32.mrf.mxu0
        %1039 = vdwg.mxu0
        %1040 = vmatprep.subr.mxu0 0.0
        %1041 = vmatpush1.msra.mxu0 0.0
        %1042 = vmatprep.subr.mxu0 0.0
        %1043 = vmatpush1.msra.mxu0 0.0
        %1044 = vmatprep.subr.mxu0 0.0
        %1045 = vmatpush1.msra.mxu0 0.0
        %1046 = vmatprep.subr.mxu0 0.0
        %1047 = vmatpush1.msra.mxu0 0.0
        %1048 = vmatprep.subr.mxu0 0.0
        %1049 = vmatpush1.msra.mxu0 0.0
        %1050 = vmatprep.subr.mxu0 0.0
        %1051 = vmatpush1.msra.mxu0 0.0
        %1052 = vmatprep.subr.mxu0 0.0
        %1053 = vmatpush1.msra.mxu0 0.0
        %1054 = vmatprep.subr.mxu0 0.0
        %1055 = vmatpush1.msra.mxu0 0.0
        %1056 = vmatprep.subr.mxu0 0.0
        %1057 = vmatpush1.msra.mxu0 0.0
        %1058 = vmatprep.subr.mxu0 0.0
        %1059 = vmatpush1.msra.mxu0 0.0
        %1060 = vmatprep.subr.mxu0 0.0
        %1061 = vmatpush1.msra.mxu0 0.0
        %1062 = vmatprep.subr.mxu0 0.0
        %1063 = vmatpush1.msra.mxu0 0.0
        %1064 = vmatprep.subr.mxu0 0.0
        %1065 = vmatpush1.msra.mxu0 %v964
        %1066 = vmatprep.subr.mxu0 0.0
        %1067 = vmatpush1.msra.mxu0 %v963
        %1068 = vmatprep.subr.mxu0 0.0
        %1069 = vmatpush1.msra.mxu0 %v962
        %1070 = vmatprep.subr.mxu0 0.0
        %1071 = vmatpush1.msra.mxu0 %v961
        %1072 = vmatprep.subr.mxu0 0.0
        %1073 = vmatpush2.msra.mxu0 0.0
        %1074 = vmatprep.subr.mxu0 0.0
        %1075 = vmatpush2.msra.mxu0 0.0
        %1076 = vmatprep.subr.mxu0 0.0
        %1077 = vmatpush2.msra.mxu0 0.0
        %1078 = vmatprep.subr.mxu0 0.0
        %1079 = vmatpush2.msra.mxu0 0.0
        %1080 = vmatprep.subr.mxu0 0.0
        %1081 = vmatpush2.msra.mxu0 0.0
        %1082 = vmatprep.subr.mxu0 0.0
        %1083 = vmatpush2.msra.mxu0 0.0
        %1084 = vmatprep.subr.mxu0 0.0
        %1085 = vmatpush2.msra.mxu0 0.0
        %1086 = vmatprep.subr.mxu0 0.0
        %1087 = vmatpush2.msra.mxu0 0.0
        %1088 = vmatprep.subr.mxu0 0.0
        %1089 = vmatpush2.msra.mxu0 0.0
        %1090 = vmatprep.subr.mxu0 0.0
        %1091 = vmatpush2.msra.mxu0 0.0
        %1092 = vmatprep.subr.mxu0 0.0
        %1093 = vmatpush2.msra.mxu0 0.0
        %1094 = vmatprep.subr.mxu0 0.0
        %1095 = vmatpush2.msra.mxu0 0.0
        %1096 = vmatprep.subr.mxu0 0.0
        %1097 = vmatpush2.msra.mxu0 0.0
        %1098 = vmatprep.subr.mxu0 0.0
        %1099 = vmatpush2.msra.mxu0 0.0
        %1100 = vmatprep.subr.mxu0 0.0
        %1101 = vmatpush2.msra.mxu0 0.0
        %1102 = vmatprep.subr.mxu0 0.0
        %1103 = vmatpush2.msra.mxu0 0.0
        %1104 = vmatprep.mubr.f32.mxu0 0.0
        %1105 = vmatmul.mubr.f32.gmra.mxu0 %v876
        %v1106 = vpop.f32.mrf.mxu0
        %v1107 = vadd.f32 %v1037, %v1106
        %v1108 = vpop.f32.mrf.mxu0
        %1109 = vdwg.mxu0
        %v1110 = vld [vmem:[#allocation11 + $0x3] sm:$0x1]
        %v1111 = vlaneseq
        %v1112 = vshrl.u32 %v1111, 7
        %v1113 = vsub.s32 0, %v1112
        %v1114 = vrot.slane %v1110, %v1113
        %v1115 = vadd.f32 %v1107, %v1114
        %v1116 = vxor.u32 %v1115, 2147483648
        %v1117 = vmul.f32 %v1116, 1.442695
        %v1118 = vpow.pop %v1117
        %v1119 = vadd.f32 %v1118, 1.0
        %v1120 = vrcp.pop %v1119
        %v1121 = vmul.f32 1.0, %v1120
        %s1122 = scalar_lea.vmem [#allocation9], 288
        %v1123 = vld [vmem:[%s1122] sm:$0xff]
        %v1124 = vld [vmem:[%s1122 + $0x8] sm:$0xff]
        %v1125 = vld [vmem:[%s1122 + $0x10] sm:$0xff]
        %v1126 = vld [vmem:[%s1122 + $0x18] sm:$0xff]
        %v1127 = vld [vmem:[#allocation11 + $0x4] sm:$0x1]
        %v1128 = vlaneseq
        %v1129 = vshrl.u32 %v1128, 7
        %v1130 = vsub.s32 0, %v1129
        %v1131 = vrot.slane %v1127, %v1130
        %1132 = vmatprep.subr.mxu0 0.0
        %1133 = vmatpush1.msra.mxu0 0.0
        %1134 = vmatprep.subr.mxu0 0.0
        %1135 = vmatpush1.msra.mxu0 0.0
        %1136 = vmatprep.subr.mxu0 0.0
        %1137 = vmatpush1.msra.mxu0 0.0
        %1138 = vmatprep.subr.mxu0 0.0
        %1139 = vmatpush1.msra.mxu0 0.0
        %1140 = vmatprep.subr.mxu0 0.0
        %1141 = vmatpush1.msra.mxu0 0.0
        %1142 = vmatprep.subr.mxu0 0.0
        %1143 = vmatpush1.msra.mxu0 0.0
        %1144 = vmatprep.subr.mxu0 0.0
        %1145 = vmatpush1.msra.mxu0 0.0
        %1146 = vmatprep.subr.mxu0 0.0
        %1147 = vmatpush1.msra.mxu0 0.0
        %1148 = vmatprep.subr.mxu0 0.0
        %1149 = vmatpush1.msra.mxu0 0.0
        %1150 = vmatprep.subr.mxu0 0.0
        %1151 = vmatpush1.msra.mxu0 0.0
        %1152 = vmatprep.subr.mxu0 0.0
        %1153 = vmatpush1.msra.mxu0 0.0
        %1154 = vmatprep.subr.mxu0 0.0
        %1155 = vmatpush1.msra.mxu0 0.0
        %1156 = vmatprep.subr.mxu0 0.0
        %1157 = vmatpush1.msra.mxu0 %v1126
        %1158 = vmatprep.subr.mxu0 0.0
        %1159 = vmatpush1.msra.mxu0 %v1125
        %1160 = vmatprep.subr.mxu0 0.0
        %1161 = vmatpush1.msra.mxu0 %v1124
        %1162 = vmatprep.subr.mxu0 0.0
        %1163 = vmatpush1.msra.mxu0 %v1123
        %1164 = vmatprep.subr.mxu0 0.0
        %1165 = vmatpush2.msra.mxu0 0.0
        %1166 = vmatprep.subr.mxu0 0.0
        %1167 = vmatpush2.msra.mxu0 0.0
        %1168 = vmatprep.subr.mxu0 0.0
        %1169 = vmatpush2.msra.mxu0 0.0
        %1170 = vmatprep.subr.mxu0 0.0
        %1171 = vmatpush2.msra.mxu0 0.0
        %1172 = vmatprep.subr.mxu0 0.0
        %1173 = vmatpush2.msra.mxu0 0.0
        %1174 = vmatprep.subr.mxu0 0.0
        %1175 = vmatpush2.msra.mxu0 0.0
        %1176 = vmatprep.subr.mxu0 0.0
        %1177 = vmatpush2.msra.mxu0 0.0
        %1178 = vmatprep.subr.mxu0 0.0
        %1179 = vmatpush2.msra.mxu0 0.0
        %1180 = vmatprep.subr.mxu0 0.0
        %1181 = vmatpush2.msra.mxu0 0.0
        %1182 = vmatprep.subr.mxu0 0.0
        %1183 = vmatpush2.msra.mxu0 0.0
        %1184 = vmatprep.subr.mxu0 0.0
        %1185 = vmatpush2.msra.mxu0 0.0
        %1186 = vmatprep.subr.mxu0 0.0
        %1187 = vmatpush2.msra.mxu0 0.0
        %1188 = vmatprep.subr.mxu0 0.0
        %1189 = vmatpush2.msra.mxu0 0.0
        %1190 = vmatprep.subr.mxu0 0.0
        %1191 = vmatpush2.msra.mxu0 0.0
        %1192 = vmatprep.subr.mxu0 0.0
        %1193 = vmatpush2.msra.mxu0 0.0
        %1194 = vmatprep.subr.mxu0 0.0
        %1195 = vmatpush2.msra.mxu0 0.0
        %1196 = vmatprep.mubr.f32.mxu0 0.0
        %1197 = vmatmul.mubr.f32.gmra.mxu0 %v876
        %v1198 = vpop.f32.mrf.mxu0
        %v1199 = vadd.f32 %v1131, %v1198
        %v1200 = vpop.f32.mrf.mxu0
        %1201 = vdwg.mxu0
        %s1202 = scalar_lea.vmem [#allocation9], 320
        %v1203 = vld [vmem:[%s1202] sm:$0xff]
        %v1204 = vld [vmem:[%s1202 + $0x8] sm:$0xff]
        %v1205 = vld [vmem:[%s1202 + $0x10] sm:$0xff]
        %v1206 = vld [vmem:[%s1202 + $0x18] sm:$0xff]
        %v1207 = vld [vmem:[#allocation11 + $0x5] sm:$0x1]
        %v1208 = vlaneseq
        %v1209 = vshrl.u32 %v1208, 7
        %v1210 = vsub.s32 0, %v1209
        %v1211 = vrot.slane %v1207, %v1210
        %1212 = vmatprep.subr.mxu0 0.0
        %1213 = vmatpush1.msra.mxu0 0.0
        %1214 = vmatprep.subr.mxu0 0.0
        %1215 = vmatpush1.msra.mxu0 0.0
        %1216 = vmatprep.subr.mxu0 0.0
        %1217 = vmatpush1.msra.mxu0 0.0
        %1218 = vmatprep.subr.mxu0 0.0
        %1219 = vmatpush1.msra.mxu0 0.0
        %1220 = vmatprep.subr.mxu0 0.0
        %1221 = vmatpush1.msra.mxu0 0.0
        %1222 = vmatprep.subr.mxu0 0.0
        %1223 = vmatpush1.msra.mxu0 0.0
        %1224 = vmatprep.subr.mxu0 0.0
        %1225 = vmatpush1.msra.mxu0 0.0
        %1226 = vmatprep.subr.mxu0 0.0
        %1227 = vmatpush1.msra.mxu0 0.0
        %1228 = vmatprep.subr.mxu0 0.0
        %1229 = vmatpush1.msra.mxu0 0.0
        %1230 = vmatprep.subr.mxu0 0.0
        %1231 = vmatpush1.msra.mxu0 0.0
        %1232 = vmatprep.subr.mxu0 0.0
        %1233 = vmatpush1.msra.mxu0 0.0
        %1234 = vmatprep.subr.mxu0 0.0
        %1235 = vmatpush1.msra.mxu0 0.0
        %1236 = vmatprep.subr.mxu0 0.0
        %1237 = vmatpush1.msra.mxu0 %v1206
        %1238 = vmatprep.subr.mxu0 0.0
        %1239 = vmatpush1.msra.mxu0 %v1205
        %1240 = vmatprep.subr.mxu0 0.0
        %1241 = vmatpush1.msra.mxu0 %v1204
        %1242 = vmatprep.subr.mxu0 0.0
        %1243 = vmatpush1.msra.mxu0 %v1203
        %1244 = vmatprep.subr.mxu0 0.0
        %1245 = vmatpush2.msra.mxu0 0.0
        %1246 = vmatprep.subr.mxu0 0.0
        %1247 = vmatpush2.msra.mxu0 0.0
        %1248 = vmatprep.subr.mxu0 0.0
        %1249 = vmatpush2.msra.mxu0 0.0
        %1250 = vmatprep.subr.mxu0 0.0
        %1251 = vmatpush2.msra.mxu0 0.0
        %1252 = vmatprep.subr.mxu0 0.0
        %1253 = vmatpush2.msra.mxu0 0.0
        %1254 = vmatprep.subr.mxu0 0.0
        %1255 = vmatpush2.msra.mxu0 0.0
        %1256 = vmatprep.subr.mxu0 0.0
        %1257 = vmatpush2.msra.mxu0 0.0
        %1258 = vmatprep.subr.mxu0 0.0
        %1259 = vmatpush2.msra.mxu0 0.0
        %1260 = vmatprep.subr.mxu0 0.0
        %1261 = vmatpush2.msra.mxu0 0.0
        %1262 = vmatprep.subr.mxu0 0.0
        %1263 = vmatpush2.msra.mxu0 0.0
        %1264 = vmatprep.subr.mxu0 0.0
        %1265 = vmatpush2.msra.mxu0 0.0
        %1266 = vmatprep.subr.mxu0 0.0
        %1267 = vmatpush2.msra.mxu0 0.0
        %1268 = vmatprep.subr.mxu0 0.0
        %1269 = vmatpush2.msra.mxu0 0.0
        %1270 = vmatprep.subr.mxu0 0.0
        %1271 = vmatpush2.msra.mxu0 0.0
        %1272 = vmatprep.subr.mxu0 0.0
        %1273 = vmatpush2.msra.mxu0 0.0
        %1274 = vmatprep.subr.mxu0 0.0
        %1275 = vmatpush2.msra.mxu0 0.0
        %1276 = vmatprep.mubr.f32.mxu0 0.0
        %1277 = vmatmul.mubr.f32.gmra.mxu0 %v392
        %v1278 = vpop.f32.mrf.mxu0
        %v1279 = vadd.f32 %v1211, %v1278
        %v1280 = vpop.f32.mrf.mxu0
        %1281 = vdwg.mxu0
        %v1282 = vmul.f32 %v959, %v1279
        %v1283 = vadd.f32 %v1199, %v1282
        %v1284 = vtanh.pop %v1283
        %v1285 = vsub.f32 1.0, %v1121
        %v1286 = vmul.f32 %v1285, %v1284
        %v1287 = vmul.f32 %v1121, %v301
        %v1288 = vadd.f32 %v1286, %v1287
        %1289 = vst.msk [vmem:[#allocation2] sm:$0xff] %vm390, %v1288
        %s1290 = scalar_lea.vmem [#allocation9], 352
        %v1291 = vld [vmem:[%s1290] sm:$0xff]
        %v1292 = vld [vmem:[%s1290 + $0x8] sm:$0xff]
        %v1293 = vld [vmem:[%s1290 + $0x10] sm:$0xff]
        %v1294 = vld [vmem:[%s1290 + $0x18] sm:$0xff]
        %v1295 = vld [vmem:[#allocation11 + $0x6] sm:$0x1]
        %v1296 = vlaneseq
        %v1297 = vshrl.u32 %v1296, 7
        %v1298 = vsub.s32 0, %v1297
        %v1299 = vrot.slane %v1295, %v1298
        %v1301 = vsel %vm390, %v1288, 0
        %1303 = vmatprep.subr.mxu0 0.0
        %1304 = vmatpush1.msra.mxu0 0.0
        %1305 = vmatprep.subr.mxu0 0.0
        %1306 = vmatpush1.msra.mxu0 0.0
        %1307 = vmatprep.subr.mxu0 0.0
        %1308 = vmatpush1.msra.mxu0 0.0
        %1309 = vmatprep.subr.mxu0 0.0
        %1310 = vmatpush1.msra.mxu0 0.0
        %1311 = vmatprep.subr.mxu0 0.0
        %1312 = vmatpush1.msra.mxu0 0.0
        %1313 = vmatprep.subr.mxu0 0.0
        %1314 = vmatpush1.msra.mxu0 0.0
        %1315 = vmatprep.subr.mxu0 0.0
        %1316 = vmatpush1.msra.mxu0 0.0
        %1317 = vmatprep.subr.mxu0 0.0
        %1318 = vmatpush1.msra.mxu0 0.0
        %1319 = vmatprep.subr.mxu0 0.0
        %1320 = vmatpush1.msra.mxu0 0.0
        %1321 = vmatprep.subr.mxu0 0.0
        %1322 = vmatpush1.msra.mxu0 0.0
        %1323 = vmatprep.subr.mxu0 0.0
        %1324 = vmatpush1.msra.mxu0 0.0
        %1325 = vmatprep.subr.mxu0 0.0
        %1326 = vmatpush1.msra.mxu0 0.0
        %1327 = vmatprep.subr.mxu0 0.0
        %1328 = vmatpush1.msra.mxu0 %v1294
        %1329 = vmatprep.subr.mxu0 0.0
        %1330 = vmatpush1.msra.mxu0 %v1293
        %1331 = vmatprep.subr.mxu0 0.0
        %1332 = vmatpush1.msra.mxu0 %v1292
        %1333 = vmatprep.subr.mxu0 0.0
        %1334 = vmatpush1.msra.mxu0 %v1291
        %1335 = vmatprep.subr.mxu0 0.0
        %1336 = vmatpush2.msra.mxu0 0.0
        %1337 = vmatprep.subr.mxu0 0.0
        %1338 = vmatpush2.msra.mxu0 0.0
        %1339 = vmatprep.subr.mxu0 0.0
        %1340 = vmatpush2.msra.mxu0 0.0
        %1341 = vmatprep.subr.mxu0 0.0
        %1342 = vmatpush2.msra.mxu0 0.0
        %1343 = vmatprep.subr.mxu0 0.0
        %1344 = vmatpush2.msra.mxu0 0.0
        %1345 = vmatprep.subr.mxu0 0.0
        %1346 = vmatpush2.msra.mxu0 0.0
        %1347 = vmatprep.subr.mxu0 0.0
        %1348 = vmatpush2.msra.mxu0 0.0
        %1349 = vmatprep.subr.mxu0 0.0
        %1350 = vmatpush2.msra.mxu0 0.0
        %1351 = vmatprep.subr.mxu0 0.0
        %1352 = vmatpush2.msra.mxu0 0.0
        %1353 = vmatprep.subr.mxu0 0.0
        %1354 = vmatpush2.msra.mxu0 0.0
        %1355 = vmatprep.subr.mxu0 0.0
        %1356 = vmatpush2.msra.mxu0 0.0
        %1357 = vmatprep.subr.mxu0 0.0
        %1358 = vmatpush2.msra.mxu0 0.0
        %1359 = vmatprep.subr.mxu0 0.0
        %1360 = vmatpush2.msra.mxu0 0.0
        %1361 = vmatprep.subr.mxu0 0.0
        %1362 = vmatpush2.msra.mxu0 0.0
        %1363 = vmatprep.subr.mxu0 0.0
        %1364 = vmatpush2.msra.mxu0 0.0
        %1365 = vmatprep.subr.mxu0 0.0
        %1366 = vmatpush2.msra.mxu0 0.0
        %1367 = vmatprep.mubr.f32.mxu0 0.0
        %1368 = vmatmul.mubr.f32.gmra.mxu0 %v1301
        %v1369 = vpop.f32.mrf.mxu0
        %v1370 = vadd.f32 %v1299, %v1369
        %v1371 = vpop.f32.mrf.mxu0
        %1372 = vdwg.mxu0
        %v1373 = vsel %vm306, %v1370, -inf
        %1374 = vmax.xlane.f32.xlu0 %v1373
        %v1375 = vpop.xlane.xlu0 %1374
        %v1376 = vsub.f32 %v1370, %v1375
        %v1377 = vmul.f32 %v1376, 1.442695
        %v1378 = vpow.pop %v1377
        %v1379 = vsel %vm306, %v1378, 0.0
        %1380 = vadd.xlane.f32.xlu0 %v1379
        %v1381 = vpop.xlane.xlu0 %1380
        %v1382 = vlog2.pop %v1381
        %v1383 = vmul.f32 %v1382, 0.6931472
        %v1384 = vsub.f32 %v1376, %v1383
        %1385 = vrot.lane.b32.xlu0 %v1288, 24
        %v1386 = vpop.permute.xlu0 %1385
        %1388 = vrot.lane.b32.xlu0 %v554, 56
        %v1389 = vpop.permute.xlu0 %1388
        %v1391 = vsel %vm306, %v1384, %v1386
        %vm1392 = vcmask 457728
        %v1393 = vsel %vm1392, %v1391, %v1389
        %vm1394 = vcmask 539648
        %v1395 = vsel %vm1394, %v1393, 0.0
        %1396 = vst [vmem:[%s293] sm:$0xff] %v1395
        %s1397 = sand.u32 %s142, 1
        %s1398 = scalar_lea.sflag [#allocation5], %s1397
        %s1399 = sand.u32 %s142, 1
        %s1400 = smul.addr %s1399, 8
        %s1401 = scalar_lea.vmem [#allocation12], %s1400
        // Predicated region
        $region65: #{tpu_custom_call.1} parent=39 // pred_check
          %p1402 = pneg %p152
        $region66: #{tpu_custom_call.1} parent=39 // pred_check_branch
          %1404 = sbr.rel (%p1402) target = $region68
        $region67: #{tpu_custom_call.1} parent=39 // pred_region
          %s1406 = ssub.s32 128, 128
          %1407 = vsyncadd %s1398, %s1406
          %s1408 = smul.addr %s24, 128
          %s1409 = scalar_lea.hbm %s5, %s1408
          %s1411 = sshll.u32 %s1401, 4
          %s1412 = int_to_ptr.vmem [resolvable:$true] %s1411
          %1414 = dma.vmem_to_hbm [thread:$0]  %s1412, 128, %s1409, %s1398
        $region68: #{tpu_custom_call.1} parent=39 // pred_fallthru
          _
      $region40: #{tpu_custom_call.1} parent=5 // pred_fallthru
        _
      %p1415 = scmp.le.s32.totalorder 2, %s19
      // Predicated region
      $region69: #{tpu_custom_call.1} parent=5 // pred_check
        %p1416 = pneg %p1415
      $region70: #{tpu_custom_call.1} parent=5 // pred_check_branch
        %1418 = sbr.rel (%p1416) target = $region72
      $region71: #{tpu_custom_call.1} parent=5 // pred_region
        %s1419 = ssub.s32 %s19, 2
        // Predicated region
        $region73: #{tpu_custom_call.1} parent=71 // pred_check
          %p1420 = pneg %p158
        $region74: #{tpu_custom_call.1} parent=71 // pred_check_branch
          %1422 = sbr.rel (%p1420) target = $region76
        $region75: #{tpu_custom_call.1} parent=71 // pred_region
          %s1423 = sand.u32 %s143, 1
          %s1424 = scalar_lea.sflag [#allocation5], %s1423
          %s1425 = sand.u32 %s143, 1
          %s1426 = smul.addr %s1425, 8
          %s1427 = scalar_lea.vmem [#allocation12], %s1426
          %1428 = dma.done %s1424, 128
        $region76: #{tpu_custom_call.1} parent=71 // pred_fallthru
          _
      $region72: #{tpu_custom_call.1} parent=5 // pred_fallthru
        _
    $region6: #{tpu_custom_call.1} parent=1 // loop_footer
      %s23 = sadd.s32 1, %s19
    $region7: #{tpu_custom_call.1} parent=1 // loop_footer_branch
      %18 = sbr.rel target = $region3
    $region8: #{tpu_custom_call.1} parent=1 // loop_exit
      _
    %1429 = vsyncpa [#allocation4], 1
    %s1430 = scalar_lea.sflag [#allocation4], 1
    %1431 = vsyncpa %s1430, 1
    %1432 = vsyncpa [#allocation7], 1
    %1433 = vsyncpa [#allocation10], 1
    %1434 = vsyncpa [#allocation5], 1
    %s1435 = scalar_lea.sflag [#allocation5], 1
    %1436 = vsyncpa %s1435, 1

</llo_original>
